<compile_context>
chip_gen: v7x
topology: tpu7x:2x2x1
jax: 0.10.0
libtpu: 0.0.40
codegen_flags: <defaults>
</compile_context>

<pallas_src>
import functools

import jax
import jax.numpy as jnp
from jax import lax
from jax.experimental import pallas as pl
from jax.experimental.pallas import tpu as pltpu


# ---------------------------------------------------------------------------
# Pallas kernel: one grid step = one (basin block, time chunk).
# Refs (in order):
#   psnow_ref : [tc, bs]          snowfall
#   prain_ref : [tc, bs]          liquid precipitation
#   pet_ref   : [tc, bs]          potential evaporation
#   pk_ref    : [tc, nh, bs]      pre-activation melt param (km = exp(5*pk))
#   gp_ref    : [8, nh, bs]       gates (kp, ks, kd, gd, gl, qb, gi, ge)
#   rw_ref    : [nr, nh, bs]      routing taps pre-multiplied by ga
#   out_ref   : [tc, bs]          routed, nh-reduced streamflow (time-aligned)
#   state_ref : [3, nh, bs]       persistent Sf/Ss/Sd across time chunks
#   buf_ref   : [tc+nr-1, nh, bs] flux buffer (rows 0..nr-2 = history carry)
# ---------------------------------------------------------------------------
def _waternet_chunk_kernel(psnow_ref, prain_ref, pet_ref, pk_ref, gp_ref,
                           rw_ref, out_ref, state_ref, buf_ref):
    tcb = out_ref.shape[0]           # timesteps in this chunk (static, %8==0)
    nr = rw_ref.shape[0]             # routing taps (static)
    c = pl.program_id(1)             # time-chunk index (inner, sequential)

    # --- chunk-boundary bookkeeping ----------------------------------------
    @pl.when(c == 0)
    def _init_state():
        state_ref[...] = jnp.zeros_like(state_ref)

    if nr > 1:
        @pl.when(c == 0)
        def _zero_hist():
            buf_ref[0:nr - 1] = jnp.zeros(
                (nr - 1,) + buf_ref.shape[1:], jnp.float32)

        @pl.when(c > 0)
        def _carry_hist():
            # last (nr-1) fluxes of the previous chunk become history rows
            buf_ref[0:nr - 1] = buf_ref[tcb:tcb + nr - 1]

    # --- gates: loaded once per chunk (loop invariant) -----------------------
    kp = gp_ref[0]
    ks = gp_ref[1]
    kd = gp_ref[2]
    gd = gp_ref[3]
    gl = gp_ref[4]
    qb = gp_ref[5]
    gi = gp_ref[6]
    ge = gp_ref[7]
    one_m_gi = 1.0 - gi
    one_m_gd = 1.0 - gd

    # --- sequential bucket recurrence: fori_loop over groups of 8 steps ------
    # TODO(synk): bucket.step reconstruction (exact hydroDL source unavailable).
    def group(g, carry):
        Sf, Ss, Sd = carry
        base = pl.multiple_of(g * 8, 8)
        # aligned 8-row forcing loads, amortized across 8 unrolled steps
        ps_blk = psnow_ref[pl.ds(base, 8), :]
        pr_blk = prain_ref[pl.ds(base, 8), :]
        ev_blk = pet_ref[pl.ds(base, 8), :]
        for r in range(8):                    # partial unroll (8 steps)
            j = base + r
            ps = ps_blk[r:r + 1]              # [1, bs]
            plq = pr_blk[r:r + 1]
            ev = ev_blk[r:r + 1]
            km = jnp.exp(pk_ref[j].astype(jnp.float32) * 5.0)   # [nh, bs] EUP

            # snow bucket
            Sf1 = Sf + ps
            qf = jnp.minimum(Sf1, km)
            Sf = jnp.maximum(Sf1 - qf, 0.0)

            # shallow / soil bucket
            H = jnp.maximum(Ss + plq * one_m_gi + qf - ev * ge, 0.0)
            qp = jnp.maximum(kp * (H - gl), 0.0)
            qs_all = ks * jnp.minimum(H, gl)
            Ss = H - qp - qs_all
            qs = qs_all * one_m_gd

            # deep / groundwater bucket
            Sd1 = Sd + plq * gi + qs_all * gd
            qd = kd * Sd1 + qb
            Sd = jnp.maximum(Sd1 - qd, 0.0)

            # combined routed flux (qp + qs + qd share paramR and ga)
            buf_ref[(nr - 1) + j] = qp + qs + qd
        return (Sf, Ss, Sd)

    Sf, Ss, Sd = lax.fori_loop(
        0, tcb // 8, group, (state_ref[0], state_ref[1], state_ref[2]))
    state_ref[0] = Sf
    state_ref[1] = Ss
    state_ref[2] = Sd

    # --- routing convolution + nh reduction, vectorized over time ------------
    # out row j (abs time t = c*tc + j) = sum_{i,h} rwga[i]*flux(t-nr+1+i);
    # buf row k holds flux at abs time c*tc - (nr-1) + k.
    w = [rw_ref[i] for i in range(nr)]        # nr loads of [nh, bs], once/chunk
    for j0 in range(0, tcb, 8):               # 8-row groups: dense [8,bs] store
        acc = w[0] * buf_ref[j0:j0 + 8]                         # [8, nh, bs]
        for i in range(1, nr):
            acc = acc + w[i] * buf_ref[j0 + i:j0 + i + 8]
        out_ref[j0:j0 + 8, :] = jnp.sum(acc, axis=1)            # [8, bs]


# ---------------------------------------------------------------------------
# Tiling helpers.
# ---------------------------------------------------------------------------
def _round_up(x, m):
    return ((x + m - 1) // m) * m


def _pick_bs(ns_pad):
    # Prefer >=2 basin blocks so the "parallel" grid axis can span both
    # TensorCores on v7x; otherwise the widest 128-multiple that divides.
    for cand in (512, 384, 256, 128):
        if cand <= ns_pad and ns_pad % cand == 0 and ns_pad // cand >= 2:
            return cand
    for cand in (512, 384, 256, 128):
        if cand <= ns_pad and ns_pad % cand == 0:
            return cand
    return ns_pad


def _generation_defaults():
    """(working-set budget, vmem_limit cap, default time chunk)."""
    kind = ""
    try:
        kind = jax.devices()[0].device_kind.lower()
    except Exception:
        pass
    if "v2" in kind or "v3" in kind:                  # small-VMEM generations
        return 10 << 20, 13 << 20, 128
    if "v4" in kind or "v5" in kind or "v6" in kind:  # 128 MiB VMEM
        return 88 << 20, 112 << 20, 512
    # unknown / v7x: 64 MiB physical VMEM per TC -> leave generous headroom
    return 36 << 20, 48 << 20, 256


def _vmem_bytes(tc, bs, nh, nr, pk_bytes):
    dbl = 2  # default double-buffering of pipelined blocks
    b = dbl * 3 * tc * bs * 4            # Ps / Pl / Evp blocks
    b += dbl * tc * nh * bs * pk_bytes   # pK block
    b += dbl * 8 * nh * bs * 4           # gates
    b += dbl * nr * nh * bs * 4          # routing taps
    b += dbl * tc * bs * 4               # output block
    b += 3 * nh * bs * 4                 # state scratch
    b += (tc + nr - 1) * nh * bs * 4     # flux buffer scratch
    return b


def waternet_bucket_route(psnow, prain, pet, pk, gP8, rwga, *, tc=None,
                          bs=None, pk_stream_dtype=jnp.bfloat16):
    """psnow/prain/pet: [nt, ns]; pk: [nt, nh, ns]; gP8: [8, nh, ns];
    rwga: [nr, nh, ns].  Returns routed streamflow [nt - nr + 1, ns]."""
    nt, ns = psnow.shape
    nh = pk.shape[1]
    nr = rwga.shape[0]
    pk_bytes = jnp.dtype(pk_stream_dtype).itemsize

    budget, vmem_cap, tc_default = _generation_defaults()

    # --- lane-dense basins: pad ns to a multiple of 128 ----------------------
    ns_pad = _round_up(ns, 128)
    if ns_pad != ns:
        p2 = ((0, 0), (0, ns_pad - ns))
        p3 = ((0, 0), (0, 0), (0, ns_pad - ns))
        psnow = jnp.pad(psnow, p2)
        prain = jnp.pad(prain, p2)
        pet = jnp.pad(pet, p2)
        pk = jnp.pad(pk, p3)
        gP8 = jnp.pad(gP8, p3)
        rwga = jnp.pad(rwga, p3)
    if bs is None:
        bs = _pick_bs(ns_pad)
    assert bs % 128 == 0 and ns_pad % bs == 0, (bs, ns_pad)
    nsb = ns_pad // bs

    # --- time chunking: big chunks, clamped to problem size & VMEM budget ----
    tc_floor = _round_up(max(nr - 1, 8), 8)
    if tc is None:
        tc = tc_default
    tc = min(tc, _round_up(nt, 8))
    tc = max(_round_up(tc, 8), tc_floor)
    while _vmem_bytes(tc, bs, nh, nr, pk_bytes) > budget and tc > tc_floor:
        tc = max(_round_up(tc // 2, 8), tc_floor)
    assert tc % 8 == 0 and tc >= max(nr - 1, 1)

    ntc = pl.cdiv(nt, tc)
    nt_pad = ntc * tc
    if nt_pad != nt:
        t2 = ((0, nt_pad - nt), (0, 0))
        t3 = ((0, nt_pad - nt), (0, 0), (0, 0))
        psnow = jnp.pad(psnow, t2)
        prain = jnp.pad(prain, t2)
        pet = jnp.pad(pet, t2)
        pk = jnp.pad(pk, t3)

    pk = pk.astype(pk_stream_dtype)      # dominant HBM stream -> bf16

    est = _vmem_bytes(tc, bs, nh, nr, pk_bytes)
    vmem_limit = int(min(vmem_cap, max(est * 3 // 2 + (2 << 20), 24 << 20)))

    out = pl.pallas_call(
        _waternet_chunk_kernel,
        out_shape=jax.ShapeDtypeStruct((nt_pad, ns_pad), jnp.float32),
        grid_spec=pltpu.PrefetchScalarGridSpec(
            num_scalar_prefetch=0,
            grid=(nsb, ntc),                     # (basins-parallel, time-seq)
            in_specs=[
                pl.BlockSpec((tc, bs), lambda sb, c: (c, sb)),        # Ps
                pl.BlockSpec((tc, bs), lambda sb, c: (c, sb)),        # Pl
                pl.BlockSpec((tc, bs), lambda sb, c: (c, sb)),        # Evp
                pl.BlockSpec((tc, nh, bs), lambda sb, c: (c, 0, sb)), # pK
                pl.BlockSpec((8, nh, bs), lambda sb, c: (0, 0, sb)),  # gates
                pl.BlockSpec((nr, nh, bs), lambda sb, c: (0, 0, sb)), # taps*ga
            ],
            out_specs=pl.BlockSpec((tc, bs), lambda sb, c: (c, sb)),
            scratch_shapes=[
                pltpu.VMEM((3, nh, bs), jnp.float32),            # Sf, Ss, Sd
                pltpu.VMEM((tc + nr - 1, nh, bs), jnp.float32),  # flux + hist
            ],
        ),
        compiler_params=pltpu.CompilerParams(
            dimension_semantics=("parallel", "arbitrary"),
            vmem_limit_bytes=vmem_limit,
        ),
    )(psnow, prain, pet, pk, gP8, rwga)
    # rows [0, nr-1) used zero history and are discarded; rows >= nt and
    # lanes >= ns are padding.
    return out[nr - 1:nt, :ns]               # [nt - nr + 1, ns]


# ---------------------------------------------------------------------------
# Glue: deterministic parameter init + getParam / divideP (plain JAX / XLA).
# ---------------------------------------------------------------------------
def _linear_init(key, in_dim, out_dim):
    k1, k2 = jax.random.split(key)
    bound = 1.0 / float(in_dim) ** 0.5
    w = jax.random.uniform(k1, (out_dim, in_dim), jnp.float32, -bound, bound)
    b = jax.random.uniform(k2, (out_dim,), jnp.float32, -bound, bound)
    return w, b


def _linear(p, x):
    w, b = p
    return x @ w.T + b


def _hardsigmoid(x):
    return jnp.clip(x / 6.0 + 0.5, 0.0, 1.0)


def divide_p(prcp, t1, t2):
    # TODO(synk): hydroDL func.divideP source unavailable; standard linear
    # rain/snow split by (Tmin, Tmax) around 0 degC.
    denom = t2 - t1
    frac_liq = jnp.where(jnp.abs(denom) > 1e-6, t2 / denom,
                         (t2 > 0.0).astype(prcp.dtype))
    frac_liq = jnp.clip(frac_liq, 0.0, 1.0)
    p_liq = prcp * frac_liq
    p_snow = prcp - p_liq
    return p_snow, p_liq


def build_params(params, x, xc, nh, nr):
    f = x[:, :, 2:]                                  # [nt, ns, 4] (T1,T2,Rad,Hum)
    state = _linear(params['FC'], xc)                # [ns, hs]
    # eval mode: DropMask is identity.
    pK = _linear(params['FC_kout'],
                 jnp.tanh(_linear(params['FC_kin'], f) + state))   # [nt, ns, nh]
    pG = _linear(params['FC_g'], jnp.tanh(state))                  # [ns, 9*nh]
    pR = _linear(params['FC_r'], jnp.tanh(state))                  # [ns, (nr+1)*nh]

    def chunk(k):
        return pG[:, k * nh:(k + 1) * nh]

    kp = jax.nn.sigmoid(chunk(0))
    ks = jax.nn.sigmoid(chunk(1))
    kd = jax.nn.sigmoid(chunk(2))
    gd = jax.nn.sigmoid(chunk(3))
    gl = (jax.nn.sigmoid(chunk(4)) * 10.0) ** 3
    qb = jax.nn.relu(chunk(5)) / 10.0
    ga = jax.nn.softmax(chunk(6), axis=-1)
    gi = _hardsigmoid(chunk(7)) / 2.0
    ge = jax.nn.relu(chunk(8))
    gP8 = jnp.stack([kp, ks, kd, gd, gl, qb, gi, ge], axis=0)       # [8, ns, nh]

    # TODO(synk): hydroDL func.onePeakWeight source unavailable; using a
    # softmax over the nr routing taps (single-mode weights summing to 1).
    ns = pR.shape[0]
    pRr = pR.reshape(ns, nr + 1, nh)
    rW = jnp.transpose(jax.nn.softmax(pRr[:, :nr, :], axis=1), (1, 0, 2))
    rwga = rW * ga[None]                             # fold ga into routing taps

    # lane-dense layout for the kernel: basins (ns) on the lane axis.
    pk_t = jnp.transpose(pK, (0, 2, 1))              # [nt, nh, ns]
    gP8_t = jnp.transpose(gP8, (0, 2, 1))            # [8, nh, ns]
    rwga_t = jnp.transpose(rwga, (0, 2, 1))          # [nr, nh, ns]
    return pk_t, gP8_t, rwga_t


def waternet0313_forward(params, x, xc, nh, nr, tc=None, bs=None):
    """x: [nt, ns, 6] = (Prcp, Evp, T1, T2, Rad, Hum); xc: [ns, ng]."""
    prcp, evp, t1, t2 = x[..., 0], x[..., 1], x[..., 2], x[..., 3]
    p_snow, p_liq = divide_p(prcp, t1, t2)           # [nt, ns] each
    pk, gP8, rwga = build_params(params, x, xc, nh, nr)
    return waternet_bucket_route(p_snow, p_liq, evp, pk, gP8, rwga,
                                 tc=tc, bs=bs)       # [nt - nr + 1, ns]


# ---------------------------------------------------------------------------
# Pure-JAX reference (lax.scan recurrence + einsum routing) for validation.
# ---------------------------------------------------------------------------
def waternet_reference(p_snow, p_liq, pet, pk, gP8, rwga):
    nt = p_snow.shape[0]
    nh, ns = pk.shape[1], pk.shape[2]
    nr = rwga.shape[0]
    kp, ks, kd, gd, gl, qb, gi, ge = [gP8[i] for i in range(8)]

    def step(carry, inp):
        Sf, Ss, Sd = carry
        ps, plq, ev, pkt = inp
        ps, plq, ev = ps[None, :], plq[None, :], ev[None, :]
        km = jnp.exp(pkt * 5.0)
        Sf1 = Sf + ps
        qf = jnp.minimum(Sf1, km)
        Sf = jnp.maximum(Sf1 - qf, 0.0)
        H = jnp.maximum(Ss + plq * (1.0 - gi) + qf - ev * ge, 0.0)
        qp = jnp.maximum(kp * (H - gl), 0.0)
        qs_all = ks * jnp.minimum(H, gl)
        Ss = H - qp - qs_all
        qs = qs_all * (1.0 - gd)
        Sd1 = Sd + plq * gi + qs_all * gd
        qd = kd * Sd1 + qb
        Sd = jnp.maximum(Sd1 - qd, 0.0)
        return (Sf, Ss, Sd), qp + qs + qd

    z = jnp.zeros((nh, ns), jnp.float32)
    _, flux = lax.scan(step, (z, z, z), (p_snow, p_liq, pet, pk))  # [nt,nh,ns]
    nq = nt - nr + 1
    windows = jnp.stack([flux[i:i + nq] for i in range(nr)], 0)
    return jnp.einsum('rthn,rhn->tn', windows, rwga)               # [nq, ns]


if __name__ == "__main__":
    nt, ns = 29, 4
    nf, ng, nh, nr, hs = 6, 8, 16, 4, 32

    key = jax.random.PRNGKey(0)
    kx, kc, k1, k2, k3, k4, k5 = jax.random.split(key, 7)

    x = jax.random.normal(kx, (nt, ns, nf), jnp.float32)
    x = x.at[..., 0].set(jax.nn.relu(x[..., 0]) * 10.0)   # precipitation >= 0
    x = x.at[..., 1].set(jax.nn.relu(x[..., 1]) * 2.0)    # PET >= 0
    xc = jax.random.normal(kc, (ns, ng), jnp.float32)

    params = {
        'FC':      _linear_init(k1, ng, hs),
        'FC_r':    _linear_init(k2, hs, nh * (nr + 1)),
        'FC_g':    _linear_init(k3, hs, nh * 9),
        'FC_kin':  _linear_init(k4, 4, hs),
        'FC_kout': _linear_init(k5, hs, nh * 1),
    }

    fwd = jax.jit(functools.partial(waternet0313_forward, nh=nh, nr=nr))
    qout = fwd(params, x, xc)
    jax.block_until_ready(qout)
    assert qout.shape == (nt - nr + 1, ns), qout.shape
    assert bool(jnp.all(jnp.isfinite(qout)))

    # cross-check against the pure-JAX reference, using the same bf16-quantized
    # pK the kernel streams so the check isolates kernel correctness.
    prcp, evp, t1, t2 = x[..., 0], x[..., 1], x[..., 2], x[..., 3]
    p_snow, p_liq = divide_p(prcp, t1, t2)
    pk_t, gP8_t, rwga_t = build_params(params, x, xc, nh, nr)
    pk_q = pk_t.astype(jnp.bfloat16).astype(jnp.float32)
    ref = waternet_reference(p_snow, p_liq, evp, pk_q, gP8_t, rwga_t)
    err = float(jnp.max(jnp.abs(qout - ref)))
    assert bool(jnp.allclose(qout, ref, rtol=2e-3, atol=2e-3)), err

    print("KERNEL_OK")
</pallas_src>

<mosaic_0001>
module attributes {stable_mosaic.version = 11 : i64} {
  func.func @_waternet_chunk_kernel(%arg0: i32, %arg1: i32, %arg2: memref<32x128xf32, #tpu.memory_space<vmem>>, %arg3: memref<32x128xf32, #tpu.memory_space<vmem>>, %arg4: memref<32x128xf32, #tpu.memory_space<vmem>>, %arg5: memref<32x16x128xbf16, #tpu.memory_space<vmem>>, %arg6: memref<8x16x128xf32, #tpu.memory_space<vmem>>, %arg7: memref<4x16x128xf32, #tpu.memory_space<vmem>>, %arg8: memref<32x128xf32, #tpu.memory_space<vmem>>, %arg9: memref<3x16x128xf32, #tpu.memory_space<vmem>>, %arg10: memref<35x16x128xf32, #tpu.memory_space<vmem>>) attributes {dimension_semantics = [#tpu.dimension_semantics<parallel>, #tpu.dimension_semantics<arbitrary>], iteration_bounds = array<i64: 1, 1>, scalar_prefetch = 0 : i64, scratch_operands = 2 : i64, tpu.core_type = #tpu.core_type<tc>, window_params = [{transform_indices = @transform_0, window_bounds = array<i64: 32, 128>}, {transform_indices = @transform_1, window_bounds = array<i64: 32, 128>}, {transform_indices = @transform_2, window_bounds = array<i64: 32, 128>}, {transform_indices = @transform_3, window_bounds = array<i64: 32, 16, 128>}, {transform_indices = @transform_4, window_bounds = array<i64: 8, 16, 128>}, {transform_indices = @transform_5, window_bounds = array<i64: 4, 16, 128>}, {transform_indices = @transform_6, window_bounds = array<i64: 32, 128>}]} {
    %c0_i32 = arith.constant 0 : i32
    %0 = arith.cmpi eq, %arg1, %c0_i32 : i32
    %1 = arith.extui %0 : i1 to i32
    %c0_i32_0 = arith.constant 0 : i32
    %2 = arith.cmpi ne, %1, %c0_i32_0 : i32
    scf.if %2 {
      %cst_102 = arith.constant 0.000000e+00 : f32
      %138 = vector.broadcast %cst_102 : f32 to vector<3x16x128xf32>
      %c0_103 = arith.constant 0 : index
      %c0_104 = arith.constant 0 : index
      %c0_105 = arith.constant 0 : index
      %139 = vector.load %arg9[%c0_103, %c0_104, %c0_105] : memref<3x16x128xf32, #tpu.memory_space<vmem>>, vector<3x16x128xf32>
      tpu.vector_store %arg9[%c0_103, %c0_104, %c0_105], %138 {strides = array<i32>} : memref<3x16x128xf32, #tpu.memory_space<vmem>>, vector<3x16x128xf32>,
    } else {
    }
    %c0_i32_1 = arith.constant 0 : i32
    %3 = arith.cmpi eq, %arg1, %c0_i32_1 : i32
    %4 = arith.extui %3 : i1 to i32
    %c0_i32_2 = arith.constant 0 : i32
    %5 = arith.cmpi ne, %4, %c0_i32_2 : i32
    scf.if %5 {
      %cst_102 = arith.constant 0.000000e+00 : f32
      %138 = vector.broadcast %cst_102 : f32 to vector<3x16x128xf32>
      %c0_103 = arith.constant 0 : index
      %c0_104 = arith.constant 0 : index
      %c0_105 = arith.constant 0 : index
      %139 = vector.load %arg10[%c0_103, %c0_104, %c0_105] : memref<35x16x128xf32, #tpu.memory_space<vmem>>, vector<3x16x128xf32>
      tpu.vector_store %arg10[%c0_103, %c0_104, %c0_105], %138 {strides = array<i32>} : memref<35x16x128xf32, #tpu.memory_space<vmem>>, vector<3x16x128xf32>,
    } else {
    }
    %c0_i32_3 = arith.constant 0 : i32
    %6 = arith.cmpi sgt, %arg1, %c0_i32_3 : i32
    %7 = arith.extui %6 : i1 to i32
    %c0_i32_4 = arith.constant 0 : i32
    %8 = arith.cmpi ne, %7, %c0_i32_4 : i32
    scf.if %8 {
      %c32 = arith.constant 32 : index
      %c0_102 = arith.constant 0 : index
      %c0_103 = arith.constant 0 : index
      %138 = vector.load %arg10[%c32, %c0_102, %c0_103] : memref<35x16x128xf32, #tpu.memory_space<vmem>>, vector<3x16x128xf32>
      %c0_104 = arith.constant 0 : index
      %c0_105 = arith.constant 0 : index
      %c0_106 = arith.constant 0 : index
      %139 = vector.load %arg10[%c0_104, %c0_105, %c0_106] : memref<35x16x128xf32, #tpu.memory_space<vmem>>, vector<3x16x128xf32>
      tpu.vector_store %arg10[%c0_104, %c0_105, %c0_106], %138 {strides = array<i32>} : memref<35x16x128xf32, #tpu.memory_space<vmem>>, vector<3x16x128xf32>,
    } else {
    }
    %c0 = arith.constant 0 : index
    %c0_5 = arith.constant 0 : index
    %c0_6 = arith.constant 0 : index
    %9 = vector.load %arg6[%c0, %c0_5, %c0_6] : memref<8x16x128xf32, #tpu.memory_space<vmem>>, vector<1x16x128xf32>
    %10 = vector.shape_cast %9 : vector<1x16x128xf32> to vector<16x128xf32>
    %c1 = arith.constant 1 : index
    %c0_7 = arith.constant 0 : index
    %c0_8 = arith.constant 0 : index
    %11 = vector.load %arg6[%c1, %c0_7, %c0_8] : memref<8x16x128xf32, #tpu.memory_space<vmem>>, vector<1x16x128xf32>
    %12 = vector.shape_cast %11 : vector<1x16x128xf32> to vector<16x128xf32>
    %c2 = arith.constant 2 : index
    %c0_9 = arith.constant 0 : index
    %c0_10 = arith.constant 0 : index
    %13 = vector.load %arg6[%c2, %c0_9, %c0_10] : memref<8x16x128xf32, #tpu.memory_space<vmem>>, vector<1x16x128xf32>
    %14 = vector.shape_cast %13 : vector<1x16x128xf32> to vector<16x128xf32>
    %c3 = arith.constant 3 : index
    %c0_11 = arith.constant 0 : index
    %c0_12 = arith.constant 0 : index
    %15 = vector.load %arg6[%c3, %c0_11, %c0_12] : memref<8x16x128xf32, #tpu.memory_space<vmem>>, vector<1x16x128xf32>
    %16 = vector.shape_cast %15 : vector<1x16x128xf32> to vector<16x128xf32>
    %c4 = arith.constant 4 : index
    %c0_13 = arith.constant 0 : index
    %c0_14 = arith.constant 0 : index
    %17 = vector.load %arg6[%c4, %c0_13, %c0_14] : memref<8x16x128xf32, #tpu.memory_space<vmem>>, vector<1x16x128xf32>
    %18 = vector.shape_cast %17 : vector<1x16x128xf32> to vector<16x128xf32>
    %c5 = arith.constant 5 : index
    %c0_15 = arith.constant 0 : index
    %c0_16 = arith.constant 0 : index
    %19 = vector.load %arg6[%c5, %c0_15, %c0_16] : memref<8x16x128xf32, #tpu.memory_space<vmem>>, vector<1x16x128xf32>
    %20 = vector.shape_cast %19 : vector<1x16x128xf32> to vector<16x128xf32>
    %c6 = arith.constant 6 : index
    %c0_17 = arith.constant 0 : index
    %c0_18 = arith.constant 0 : index
    %21 = vector.load %arg6[%c6, %c0_17, %c0_18] : memref<8x16x128xf32, #tpu.memory_space<vmem>>, vector<1x16x128xf32>
    %22 = vector.shape_cast %21 : vector<1x16x128xf32> to vector<16x128xf32>
    %c7 = arith.constant 7 : index
    %c0_19 = arith.constant 0 : index
    %c0_20 = arith.constant 0 : index
    %23 = vector.load %arg6[%c7, %c0_19, %c0_20] : memref<8x16x128xf32, #tpu.memory_space<vmem>>, vector<1x16x128xf32>
    %24 = vector.shape_cast %23 : vector<1x16x128xf32> to vector<16x128xf32>
    %cst = arith.constant 1.000000e+00 : f32
    %25 = vector.broadcast %cst : f32 to vector<16x128xf32>
    %26 = arith.subf %25, %22 : vector<16x128xf32>
    %cst_21 = arith.constant 1.000000e+00 : f32
    %27 = vector.broadcast %cst_21 : f32 to vector<16x128xf32>
    %28 = arith.subf %27, %16 : vector<16x128xf32>
    %c0_22 = arith.constant 0 : index
    %c0_23 = arith.constant 0 : index
    %c0_24 = arith.constant 0 : index
    %29 = vector.load %arg9[%c0_22, %c0_23, %c0_24] : memref<3x16x128xf32, #tpu.memory_space<vmem>>, vector<1x16x128xf32>
    %30 = vector.shape_cast %29 : vector<1x16x128xf32> to vector<16x128xf32>
    %c1_25 = arith.constant 1 : index
    %c0_26 = arith.constant 0 : index
    %c0_27 = arith.constant 0 : index
    %31 = vector.load %arg9[%c1_25, %c0_26, %c0_27] : memref<3x16x128xf32, #tpu.memory_space<vmem>>, vector<1x16x128xf32>
    %32 = vector.shape_cast %31 : vector<1x16x128xf32> to vector<16x128xf32>
    %c2_28 = arith.constant 2 : index
    %c0_29 = arith.constant 0 : index
    %c0_30 = arith.constant 0 : index
    %33 = vector.load %arg9[%c2_28, %c0_29, %c0_30] : memref<3x16x128xf32, #tpu.memory_space<vmem>>, vector<1x16x128xf32>
    %34 = vector.shape_cast %33 : vector<1x16x128xf32> to vector<16x128xf32>
    %c0_i32_31 = arith.constant 0 : i32
    %c4_i32 = arith.constant 4 : i32
    %35 = arith.addi %c0_i32_31, %c4_i32 : i32
    %c1_i32 = arith.constant 1 : i32
    %36:3 = scf.for %arg11 = %c0_i32_31 to %35 step %c1_i32 iter_args(%arg12 = %30, %arg13 = %32, %arg14 = %34) -> (vector<16x128xf32>, vector<16x128xf32>, vector<16x128xf32>)  : i32 {
      %c8_i32 = arith.constant 8 : i32
      %138 = arith.muli %arg11, %c8_i32 : i32
      %139 = tpu.assume_multiple %138, 8 : i32
      %140 = arith.index_cast %139 : i32 to index
      %c0_102 = arith.constant 0 : index
      %141 = vector.load %arg2[%140, %c0_102] : memref<32x128xf32, #tpu.memory_space<vmem>>, vector<8x128xf32>
      %142 = arith.index_cast %139 : i32 to index
      %c0_103 = arith.constant 0 : index
      %143 = vector.load %arg3[%142, %c0_103] : memref<32x128xf32, #tpu.memory_space<vmem>>, vector<8x128xf32>
      %144 = arith.index_cast %139 : i32 to index
      %c0_104 = arith.constant 0 : index
      %145 = vector.load %arg4[%144, %c0_104] : memref<32x128xf32, #tpu.memory_space<vmem>>, vector<8x128xf32>
      %c0_i32_105 = arith.constant 0 : i32
      %146 = arith.addi %139, %c0_i32_105 : i32
      %147 = vector.extract_strided_slice %141 {offsets = [0, 0], sizes = [1, 128], strides = [1, 1]} : vector<8x128xf32> to vector<1x128xf32>
      %148 = vector.extract_strided_slice %143 {offsets = [0, 0], sizes = [1, 128], strides = [1, 1]} : vector<8x128xf32> to vector<1x128xf32>
      %149 = vector.extract_strided_slice %145 {offsets = [0, 0], sizes = [1, 128], strides = [1, 1]} : vector<8x128xf32> to vector<1x128xf32>
      %150 = arith.index_cast %146 : i32 to index
      %c0_106 = arith.constant 0 : index
      %c0_107 = arith.constant 0 : index
      %151 = vector.load %arg5[%150, %c0_106, %c0_107] : memref<32x16x128xbf16, #tpu.memory_space<vmem>>, vector<1x16x128xbf16>
      %152 = vector.shape_cast %151 : vector<1x16x128xbf16> to vector<16x128xbf16>
      %153 = arith.extf %152 : vector<16x128xbf16> to vector<16x128xf32>
      %cst_108 = arith.constant 5.000000e+00 : f32
      %154 = vector.broadcast %cst_108 : f32 to vector<16x128xf32>
      %155 = arith.mulf %153, %154 : vector<16x128xf32>
      %156 = math.exp %155 : vector<16x128xf32>
      %157 = vector.broadcast %147 : vector<1x128xf32> to vector<16x128xf32>
      %158 = arith.addf %arg12, %157 : vector<16x128xf32>
      %159 = arith.minimumf %158, %156 : vector<16x128xf32>
      %160 = arith.subf %158, %159 : vector<16x128xf32>
      %cst_109 = arith.constant 0.000000e+00 : f32
      %161 = vector.broadcast %cst_109 : f32 to vector<16x128xf32>
      %162 = arith.maximumf %160, %161 : vector<16x128xf32>
      %163 = vector.broadcast %148 : vector<1x128xf32> to vector<16x128xf32>
      %164 = arith.mulf %163, %26 : vector<16x128xf32>
      %165 = arith.addf %arg13, %164 : vector<16x128xf32>
      %166 = arith.addf %165, %159 : vector<16x128xf32>
      %167 = vector.broadcast %149 : vector<1x128xf32> to vector<16x128xf32>
      %168 = arith.mulf %167, %24 : vector<16x128xf32>
      %169 = arith.subf %166, %168 : vector<16x128xf32>
      %cst_110 = arith.constant 0.000000e+00 : f32
      %170 = vector.broadcast %cst_110 : f32 to vector<16x128xf32>
      %171 = arith.maximumf %169, %170 : vector<16x128xf32>
      %172 = arith.subf %171, %18 : vector<16x128xf32>
      %173 = arith.mulf %10, %172 : vector<16x128xf32>
      %cst_111 = arith.constant 0.000000e+00 : f32
      %174 = vector.broadcast %cst_111 : f32 to vector<16x128xf32>
      %175 = arith.maximumf %173, %174 : vector<16x128xf32>
      %176 = arith.minimumf %171, %18 : vector<16x128xf32>
      %177 = arith.mulf %12, %176 : vector<16x128xf32>
      %178 = arith.subf %171, %175 : vector<16x128xf32>
      %179 = arith.subf %178, %177 : vector<16x128xf32>
      %180 = arith.mulf %177, %28 : vector<16x128xf32>
      %181 = vector.broadcast %148 : vector<1x128xf32> to vector<16x128xf32>
      %182 = arith.mulf %181, %22 : vector<16x128xf32>
      %183 = arith.addf %arg14, %182 : vector<16x128xf32>
      %184 = arith.mulf %177, %16 : vector<16x128xf32>
      %185 = arith.addf %183, %184 : vector<16x128xf32>
      %186 = arith.mulf %14, %185 : vector<16x128xf32>
      %187 = arith.addf %186, %20 : vector<16x128xf32>
      %188 = arith.subf %185, %187 : vector<16x128xf32>
      %cst_112 = arith.constant 0.000000e+00 : f32
      %189 = vector.broadcast %cst_112 : f32 to vector<16x128xf32>
      %190 = arith.maximumf %188, %189 : vector<16x128xf32>
      %191 = arith.addf %175, %180 : vector<16x128xf32>
      %192 = arith.addf %191, %187 : vector<16x128xf32>
      %c3_i32 = arith.constant 3 : i32
      %193 = arith.addi %c3_i32, %146 : i32
      %194 = arith.index_cast %193 : i32 to index
      %c0_113 = arith.constant 0 : index
      %c0_114 = arith.constant 0 : index
      %195 = vector.load %arg10[%194, %c0_113, %c0_114] : memref<35x16x128xf32, #tpu.memory_space<vmem>>, vector<1x16x128xf32>
      %196 = vector.shape_cast %195 : vector<1x16x128xf32> to vector<16x128xf32>
      %197 = vector.shape_cast %192 : vector<16x128xf32> to vector<1x16x128xf32>
      tpu.vector_store %arg10[%194, %c0_113, %c0_114], %197 {strides = array<i32>} : memref<35x16x128xf32, #tpu.memory_space<vmem>>, vector<1x16x128xf32>,
      %c1_i32_115 = arith.constant 1 : i32
      %198 = arith.addi %139, %c1_i32_115 : i32
      %199 = vector.extract_strided_slice %141 {offsets = [1, 0], sizes = [1, 128], strides = [1, 1]} : vector<8x128xf32> to vector<1x128xf32>
      %200 = vector.extract_strided_slice %143 {offsets = [1, 0], sizes = [1, 128], strides = [1, 1]} : vector<8x128xf32> to vector<1x128xf32>
      %201 = vector.extract_strided_slice %145 {offsets = [1, 0], sizes = [1, 128], strides = [1, 1]} : vector<8x128xf32> to vector<1x128xf32>
      %202 = arith.index_cast %198 : i32 to index
      %c0_116 = arith.constant 0 : index
      %c0_117 = arith.constant 0 : index
      %203 = vector.load %arg5[%202, %c0_116, %c0_117] : memref<32x16x128xbf16, #tpu.memory_space<vmem>>, vector<1x16x128xbf16>
      %204 = vector.shape_cast %203 : vector<1x16x128xbf16> to vector<16x128xbf16>
      %205 = arith.extf %204 : vector<16x128xbf16> to vector<16x128xf32>
      %cst_118 = arith.constant 5.000000e+00 : f32
      %206 = vector.broadcast %cst_118 : f32 to vector<16x128xf32>
      %207 = arith.mulf %205, %206 : vector<16x128xf32>
      %208 = math.exp %207 : vector<16x128xf32>
      %209 = vector.broadcast %199 : vector<1x128xf32> to vector<16x128xf32>
      %210 = arith.addf %162, %209 : vector<16x128xf32>
      %211 = arith.minimumf %210, %208 : vector<16x128xf32>
      %212 = arith.subf %210, %211 : vector<16x128xf32>
      %cst_119 = arith.constant 0.000000e+00 : f32
      %213 = vector.broadcast %cst_119 : f32 to vector<16x128xf32>
      %214 = arith.maximumf %212, %213 : vector<16x128xf32>
      %215 = vector.broadcast %200 : vector<1x128xf32> to vector<16x128xf32>
      %216 = arith.mulf %215, %26 : vector<16x128xf32>
      %217 = arith.addf %179, %216 : vector<16x128xf32>
      %218 = arith.addf %217, %211 : vector<16x128xf32>
      %219 = vector.broadcast %201 : vector<1x128xf32> to vector<16x128xf32>
      %220 = arith.mulf %219, %24 : vector<16x128xf32>
      %221 = arith.subf %218, %220 : vector<16x128xf32>
      %cst_120 = arith.constant 0.000000e+00 : f32
      %222 = vector.broadcast %cst_120 : f32 to vector<16x128xf32>
      %223 = arith.maximumf %221, %222 : vector<16x128xf32>
      %224 = arith.subf %223, %18 : vector<16x128xf32>
      %225 = arith.mulf %10, %224 : vector<16x128xf32>
      %cst_121 = arith.constant 0.000000e+00 : f32
      %226 = vector.broadcast %cst_121 : f32 to vector<16x128xf32>
      %227 = arith.maximumf %225, %226 : vector<16x128xf32>
      %228 = arith.minimumf %223, %18 : vector<16x128xf32>
      %229 = arith.mulf %12, %228 : vector<16x128xf32>
      %230 = arith.subf %223, %227 : vector<16x128xf32>
      %231 = arith.subf %230, %229 : vector<16x128xf32>
      %232 = arith.mulf %229, %28 : vector<16x128xf32>
      %233 = vector.broadcast %200 : vector<1x128xf32> to vector<16x128xf32>
      %234 = arith.mulf %233, %22 : vector<16x128xf32>
      %235 = arith.addf %190, %234 : vector<16x128xf32>
      %236 = arith.mulf %229, %16 : vector<16x128xf32>
      %237 = arith.addf %235, %236 : vector<16x128xf32>
      %238 = arith.mulf %14, %237 : vector<16x128xf32>
      %239 = arith.addf %238, %20 : vector<16x128xf32>
      %240 = arith.subf %237, %239 : vector<16x128xf32>
      %cst_122 = arith.constant 0.000000e+00 : f32
      %241 = vector.broadcast %cst_122 : f32 to vector<16x128xf32>
      %242 = arith.maximumf %240, %241 : vector<16x128xf32>
      %243 = arith.addf %227, %232 : vector<16x128xf32>
      %244 = arith.addf %243, %239 : vector<16x128xf32>
      %c3_i32_123 = arith.constant 3 : i32
      %245 = arith.addi %c3_i32_123, %198 : i32
      %246 = arith.index_cast %245 : i32 to index
      %c0_124 = arith.constant 0 : index
      %c0_125 = arith.constant 0 : index
      %247 = vector.load %arg10[%246, %c0_124, %c0_125] : memref<35x16x128xf32, #tpu.memory_space<vmem>>, vector<1x16x128xf32>
      %248 = vector.shape_cast %247 : vector<1x16x128xf32> to vector<16x128xf32>
      %249 = vector.shape_cast %244 : vector<16x128xf32> to vector<1x16x128xf32>
      tpu.vector_store %arg10[%246, %c0_124, %c0_125], %249 {strides = array<i32>} : memref<35x16x128xf32, #tpu.memory_space<vmem>>, vector<1x16x128xf32>,
      %c2_i32 = arith.constant 2 : i32
      %250 = arith.addi %139, %c2_i32 : i32
      %251 = vector.extract_strided_slice %141 {offsets = [2, 0], sizes = [1, 128], strides = [1, 1]} : vector<8x128xf32> to vector<1x128xf32>
      %252 = vector.extract_strided_slice %143 {offsets = [2, 0], sizes = [1, 128], strides = [1, 1]} : vector<8x128xf32> to vector<1x128xf32>
      %253 = vector.extract_strided_slice %145 {offsets = [2, 0], sizes = [1, 128], strides = [1, 1]} : vector<8x128xf32> to vector<1x128xf32>
      %254 = arith.index_cast %250 : i32 to index
      %c0_126 = arith.constant 0 : index
      %c0_127 = arith.constant 0 : index
      %255 = vector.load %arg5[%254, %c0_126, %c0_127] : memref<32x16x128xbf16, #tpu.memory_space<vmem>>, vector<1x16x128xbf16>
      %256 = vector.shape_cast %255 : vector<1x16x128xbf16> to vector<16x128xbf16>
      %257 = arith.extf %256 : vector<16x128xbf16> to vector<16x128xf32>
      %cst_128 = arith.constant 5.000000e+00 : f32
      %258 = vector.broadcast %cst_128 : f32 to vector<16x128xf32>
      %259 = arith.mulf %257, %258 : vector<16x128xf32>
      %260 = math.exp %259 : vector<16x128xf32>
      %261 = vector.broadcast %251 : vector<1x128xf32> to vector<16x128xf32>
      %262 = arith.addf %214, %261 : vector<16x128xf32>
      %263 = arith.minimumf %262, %260 : vector<16x128xf32>
      %264 = arith.subf %262, %263 : vector<16x128xf32>
      %cst_129 = arith.constant 0.000000e+00 : f32
      %265 = vector.broadcast %cst_129 : f32 to vector<16x128xf32>
      %266 = arith.maximumf %264, %265 : vector<16x128xf32>
      %267 = vector.broadcast %252 : vector<1x128xf32> to vector<16x128xf32>
      %268 = arith.mulf %267, %26 : vector<16x128xf32>
      %269 = arith.addf %231, %268 : vector<16x128xf32>
      %270 = arith.addf %269, %263 : vector<16x128xf32>
      %271 = vector.broadcast %253 : vector<1x128xf32> to vector<16x128xf32>
      %272 = arith.mulf %271, %24 : vector<16x128xf32>
      %273 = arith.subf %270, %272 : vector<16x128xf32>
      %cst_130 = arith.constant 0.000000e+00 : f32
      %274 = vector.broadcast %cst_130 : f32 to vector<16x128xf32>
      %275 = arith.maximumf %273, %274 : vector<16x128xf32>
      %276 = arith.subf %275, %18 : vector<16x128xf32>
      %277 = arith.mulf %10, %276 : vector<16x128xf32>
      %cst_131 = arith.constant 0.000000e+00 : f32
      %278 = vector.broadcast %cst_131 : f32 to vector<16x128xf32>
      %279 = arith.maximumf %277, %278 : vector<16x128xf32>
      %280 = arith.minimumf %275, %18 : vector<16x128xf32>
      %281 = arith.mulf %12, %280 : vector<16x128xf32>
      %282 = arith.subf %275, %279 : vector<16x128xf32>
      %283 = arith.subf %282, %281 : vector<16x128xf32>
      %284 = arith.mulf %281, %28 : vector<16x128xf32>
      %285 = vector.broadcast %252 : vector<1x128xf32> to vector<16x128xf32>
      %286 = arith.mulf %285, %22 : vector<16x128xf32>
      %287 = arith.addf %242, %286 : vector<16x128xf32>
      %288 = arith.mulf %281, %16 : vector<16x128xf32>
      %289 = arith.addf %287, %288 : vector<16x128xf32>
      %290 = arith.mulf %14, %289 : vector<16x128xf32>
      %291 = arith.addf %290, %20 : vector<16x128xf32>
      %292 = arith.subf %289, %291 : vector<16x128xf32>
      %cst_132 = arith.constant 0.000000e+00 : f32
      %293 = vector.broadcast %cst_132 : f32 to vector<16x128xf32>
      %294 = arith.maximumf %292, %293 : vector<16x128xf32>
      %295 = arith.addf %279, %284 : vector<16x128xf32>
      %296 = arith.addf %295, %291 : vector<16x128xf32>
      %c3_i32_133 = arith.constant 3 : i32
      %297 = arith.addi %c3_i32_133, %250 : i32
      %298 = arith.index_cast %297 : i32 to index
      %c0_134 = arith.constant 0 : index
      %c0_135 = arith.constant 0 : index
      %299 = vector.load %arg10[%298, %c0_134, %c0_135] : memref<35x16x128xf32, #tpu.memory_space<vmem>>, vector<1x16x128xf32>
      %300 = vector.shape_cast %299 : vector<1x16x128xf32> to vector<16x128xf32>
      %301 = vector.shape_cast %296 : vector<16x128xf32> to vector<1x16x128xf32>
      tpu.vector_store %arg10[%298, %c0_134, %c0_135], %301 {strides = array<i32>} : memref<35x16x128xf32, #tpu.memory_space<vmem>>, vector<1x16x128xf32>,
      %c3_i32_136 = arith.constant 3 : i32
      %302 = arith.addi %139, %c3_i32_136 : i32
      %303 = vector.extract_strided_slice %141 {offsets = [3, 0], sizes = [1, 128], strides = [1, 1]} : vector<8x128xf32> to vector<1x128xf32>
      %304 = vector.extract_strided_slice %143 {offsets = [3, 0], sizes = [1, 128], strides = [1, 1]} : vector<8x128xf32> to vector<1x128xf32>
      %305 = vector.extract_strided_slice %145 {offsets = [3, 0], sizes = [1, 128], strides = [1, 1]} : vector<8x128xf32> to vector<1x128xf32>
      %306 = arith.index_cast %302 : i32 to index
      %c0_137 = arith.constant 0 : index
      %c0_138 = arith.constant 0 : index
      %307 = vector.load %arg5[%306, %c0_137, %c0_138] : memref<32x16x128xbf16, #tpu.memory_space<vmem>>, vector<1x16x128xbf16>
      %308 = vector.shape_cast %307 : vector<1x16x128xbf16> to vector<16x128xbf16>
      %309 = arith.extf %308 : vector<16x128xbf16> to vector<16x128xf32>
      %cst_139 = arith.constant 5.000000e+00 : f32
      %310 = vector.broadcast %cst_139 : f32 to vector<16x128xf32>
      %311 = arith.mulf %309, %310 : vector<16x128xf32>
      %312 = math.exp %311 : vector<16x128xf32>
      %313 = vector.broadcast %303 : vector<1x128xf32> to vector<16x128xf32>
      %314 = arith.addf %266, %313 : vector<16x128xf32>
      %315 = arith.minimumf %314, %312 : vector<16x128xf32>
      %316 = arith.subf %314, %315 : vector<16x128xf32>
      %cst_140 = arith.constant 0.000000e+00 : f32
      %317 = vector.broadcast %cst_140 : f32 to vector<16x128xf32>
      %318 = arith.maximumf %316, %317 : vector<16x128xf32>
      %319 = vector.broadcast %304 : vector<1x128xf32> to vector<16x128xf32>
      %320 = arith.mulf %319, %26 : vector<16x128xf32>
      %321 = arith.addf %283, %320 : vector<16x128xf32>
      %322 = arith.addf %321, %315 : vector<16x128xf32>
      %323 = vector.broadcast %305 : vector<1x128xf32> to vector<16x128xf32>
      %324 = arith.mulf %323, %24 : vector<16x128xf32>
      %325 = arith.subf %322, %324 : vector<16x128xf32>
      %cst_141 = arith.constant 0.000000e+00 : f32
      %326 = vector.broadcast %cst_141 : f32 to vector<16x128xf32>
      %327 = arith.maximumf %325, %326 : vector<16x128xf32>
      %328 = arith.subf %327, %18 : vector<16x128xf32>
      %329 = arith.mulf %10, %328 : vector<16x128xf32>
      %cst_142 = arith.constant 0.000000e+00 : f32
      %330 = vector.broadcast %cst_142 : f32 to vector<16x128xf32>
      %331 = arith.maximumf %329, %330 : vector<16x128xf32>
      %332 = arith.minimumf %327, %18 : vector<16x128xf32>
      %333 = arith.mulf %12, %332 : vector<16x128xf32>
      %334 = arith.subf %327, %331 : vector<16x128xf32>
      %335 = arith.subf %334, %333 : vector<16x128xf32>
      %336 = arith.mulf %333, %28 : vector<16x128xf32>
      %337 = vector.broadcast %304 : vector<1x128xf32> to vector<16x128xf32>
      %338 = arith.mulf %337, %22 : vector<16x128xf32>
      %339 = arith.addf %294, %338 : vector<16x128xf32>
      %340 = arith.mulf %333, %16 : vector<16x128xf32>
      %341 = arith.addf %339, %340 : vector<16x128xf32>
      %342 = arith.mulf %14, %341 : vector<16x128xf32>
      %343 = arith.addf %342, %20 : vector<16x128xf32>
      %344 = arith.subf %341, %343 : vector<16x128xf32>
      %cst_143 = arith.constant 0.000000e+00 : f32
      %345 = vector.broadcast %cst_143 : f32 to vector<16x128xf32>
      %346 = arith.maximumf %344, %345 : vector<16x128xf32>
      %347 = arith.addf %331, %336 : vector<16x128xf32>
      %348 = arith.addf %347, %343 : vector<16x128xf32>
      %c3_i32_144 = arith.constant 3 : i32
      %349 = arith.addi %c3_i32_144, %302 : i32
      %350 = arith.index_cast %349 : i32 to index
      %c0_145 = arith.constant 0 : index
      %c0_146 = arith.constant 0 : index
      %351 = vector.load %arg10[%350, %c0_145, %c0_146] : memref<35x16x128xf32, #tpu.memory_space<vmem>>, vector<1x16x128xf32>
      %352 = vector.shape_cast %351 : vector<1x16x128xf32> to vector<16x128xf32>
      %353 = vector.shape_cast %348 : vector<16x128xf32> to vector<1x16x128xf32>
      tpu.vector_store %arg10[%350, %c0_145, %c0_146], %353 {strides = array<i32>} : memref<35x16x128xf32, #tpu.memory_space<vmem>>, vector<1x16x128xf32>,
      %c4_i32_147 = arith.constant 4 : i32
      %354 = arith.addi %139, %c4_i32_147 : i32
      %355 = vector.extract_strided_slice %141 {offsets = [4, 0], sizes = [1, 128], strides = [1, 1]} : vector<8x128xf32> to vector<1x128xf32>
      %356 = vector.extract_strided_slice %143 {offsets = [4, 0], sizes = [1, 128], strides = [1, 1]} : vector<8x128xf32> to vector<1x128xf32>
      %357 = vector.extract_strided_slice %145 {offsets = [4, 0], sizes = [1, 128], strides = [1, 1]} : vector<8x128xf32> to vector<1x128xf32>
      %358 = arith.index_cast %354 : i32 to index
      %c0_148 = arith.constant 0 : index
      %c0_149 = arith.constant 0 : index
      %359 = vector.load %arg5[%358, %c0_148, %c0_149] : memref<32x16x128xbf16, #tpu.memory_space<vmem>>, vector<1x16x128xbf16>
      %360 = vector.shape_cast %359 : vector<1x16x128xbf16> to vector<16x128xbf16>
      %361 = arith.extf %360 : vector<16x128xbf16> to vector<16x128xf32>
      %cst_150 = arith.constant 5.000000e+00 : f32
      %362 = vector.broadcast %cst_150 : f32 to vector<16x128xf32>
      %363 = arith.mulf %361, %362 : vector<16x128xf32>
      %364 = math.exp %363 : vector<16x128xf32>
      %365 = vector.broadcast %355 : vector<1x128xf32> to vector<16x128xf32>
      %366 = arith.addf %318, %365 : vector<16x128xf32>
      %367 = arith.minimumf %366, %364 : vector<16x128xf32>
      %368 = arith.subf %366, %367 : vector<16x128xf32>
      %cst_151 = arith.constant 0.000000e+00 : f32
      %369 = vector.broadcast %cst_151 : f32 to vector<16x128xf32>
      %370 = arith.maximumf %368, %369 : vector<16x128xf32>
      %371 = vector.broadcast %356 : vector<1x128xf32> to vector<16x128xf32>
      %372 = arith.mulf %371, %26 : vector<16x128xf32>
      %373 = arith.addf %335, %372 : vector<16x128xf32>
      %374 = arith.addf %373, %367 : vector<16x128xf32>
      %375 = vector.broadcast %357 : vector<1x128xf32> to vector<16x128xf32>
      %376 = arith.mulf %375, %24 : vector<16x128xf32>
      %377 = arith.subf %374, %376 : vector<16x128xf32>
      %cst_152 = arith.constant 0.000000e+00 : f32
      %378 = vector.broadcast %cst_152 : f32 to vector<16x128xf32>
      %379 = arith.maximumf %377, %378 : vector<16x128xf32>
      %380 = arith.subf %379, %18 : vector<16x128xf32>
      %381 = arith.mulf %10, %380 : vector<16x128xf32>
      %cst_153 = arith.constant 0.000000e+00 : f32
      %382 = vector.broadcast %cst_153 : f32 to vector<16x128xf32>
      %383 = arith.maximumf %381, %382 : vector<16x128xf32>
      %384 = arith.minimumf %379, %18 : vector<16x128xf32>
      %385 = arith.mulf %12, %384 : vector<16x128xf32>
      %386 = arith.subf %379, %383 : vector<16x128xf32>
      %387 = arith.subf %386, %385 : vector<16x128xf32>
      %388 = arith.mulf %385, %28 : vector<16x128xf32>
      %389 = vector.broadcast %356 : vector<1x128xf32> to vector<16x128xf32>
      %390 = arith.mulf %389, %22 : vector<16x128xf32>
      %391 = arith.addf %346, %390 : vector<16x128xf32>
      %392 = arith.mulf %385, %16 : vector<16x128xf32>
      %393 = arith.addf %391, %392 : vector<16x128xf32>
      %394 = arith.mulf %14, %393 : vector<16x128xf32>
      %395 = arith.addf %394, %20 : vector<16x128xf32>
      %396 = arith.subf %393, %395 : vector<16x128xf32>
      %cst_154 = arith.constant 0.000000e+00 : f32
      %397 = vector.broadcast %cst_154 : f32 to vector<16x128xf32>
      %398 = arith.maximumf %396, %397 : vector<16x128xf32>
      %399 = arith.addf %383, %388 : vector<16x128xf32>
      %400 = arith.addf %399, %395 : vector<16x128xf32>
      %c3_i32_155 = arith.constant 3 : i32
      %401 = arith.addi %c3_i32_155, %354 : i32
      %402 = arith.index_cast %401 : i32 to index
      %c0_156 = arith.constant 0 : index
      %c0_157 = arith.constant 0 : index
      %403 = vector.load %arg10[%402, %c0_156, %c0_157] : memref<35x16x128xf32, #tpu.memory_space<vmem>>, vector<1x16x128xf32>
      %404 = vector.shape_cast %403 : vector<1x16x128xf32> to vector<16x128xf32>
      %405 = vector.shape_cast %400 : vector<16x128xf32> to vector<1x16x128xf32>
      tpu.vector_store %arg10[%402, %c0_156, %c0_157], %405 {strides = array<i32>} : memref<35x16x128xf32, #tpu.memory_space<vmem>>, vector<1x16x128xf32>,
      %c5_i32 = arith.constant 5 : i32
      %406 = arith.addi %139, %c5_i32 : i32
      %407 = vector.extract_strided_slice %141 {offsets = [5, 0], sizes = [1, 128], strides = [1, 1]} : vector<8x128xf32> to vector<1x128xf32>
      %408 = vector.extract_strided_slice %143 {offsets = [5, 0], sizes = [1, 128], strides = [1, 1]} : vector<8x128xf32> to vector<1x128xf32>
      %409 = vector.extract_strided_slice %145 {offsets = [5, 0], sizes = [1, 128], strides = [1, 1]} : vector<8x128xf32> to vector<1x128xf32>
      %410 = arith.index_cast %406 : i32 to index
      %c0_158 = arith.constant 0 : index
      %c0_159 = arith.constant 0 : index
      %411 = vector.load %arg5[%410, %c0_158, %c0_159] : memref<32x16x128xbf16, #tpu.memory_space<vmem>>, vector<1x16x128xbf16>
      %412 = vector.shape_cast %411 : vector<1x16x128xbf16> to vector<16x128xbf16>
      %413 = arith.extf %412 : vector<16x128xbf16> to vector<16x128xf32>
      %cst_160 = arith.constant 5.000000e+00 : f32
      %414 = vector.broadcast %cst_160 : f32 to vector<16x128xf32>
      %415 = arith.mulf %413, %414 : vector<16x128xf32>
      %416 = math.exp %415 : vector<16x128xf32>
      %417 = vector.broadcast %407 : vector<1x128xf32> to vector<16x128xf32>
      %418 = arith.addf %370, %417 : vector<16x128xf32>
      %419 = arith.minimumf %418, %416 : vector<16x128xf32>
      %420 = arith.subf %418, %419 : vector<16x128xf32>
      %cst_161 = arith.constant 0.000000e+00 : f32
      %421 = vector.broadcast %cst_161 : f32 to vector<16x128xf32>
      %422 = arith.maximumf %420, %421 : vector<16x128xf32>
      %423 = vector.broadcast %408 : vector<1x128xf32> to vector<16x128xf32>
      %424 = arith.mulf %423, %26 : vector<16x128xf32>
      %425 = arith.addf %387, %424 : vector<16x128xf32>
      %426 = arith.addf %425, %419 : vector<16x128xf32>
      %427 = vector.broadcast %409 : vector<1x128xf32> to vector<16x128xf32>
      %428 = arith.mulf %427, %24 : vector<16x128xf32>
      %429 = arith.subf %426, %428 : vector<16x128xf32>
      %cst_162 = arith.constant 0.000000e+00 : f32
      %430 = vector.broadcast %cst_162 : f32 to vector<16x128xf32>
      %431 = arith.maximumf %429, %430 : vector<16x128xf32>
      %432 = arith.subf %431, %18 : vector<16x128xf32>
      %433 = arith.mulf %10, %432 : vector<16x128xf32>
      %cst_163 = arith.constant 0.000000e+00 : f32
      %434 = vector.broadcast %cst_163 : f32 to vector<16x128xf32>
      %435 = arith.maximumf %433, %434 : vector<16x128xf32>
      %436 = arith.minimumf %431, %18 : vector<16x128xf32>
      %437 = arith.mulf %12, %436 : vector<16x128xf32>
      %438 = arith.subf %431, %435 : vector<16x128xf32>
      %439 = arith.subf %438, %437 : vector<16x128xf32>
      %440 = arith.mulf %437, %28 : vector<16x128xf32>
      %441 = vector.broadcast %408 : vector<1x128xf32> to vector<16x128xf32>
      %442 = arith.mulf %441, %22 : vector<16x128xf32>
      %443 = arith.addf %398, %442 : vector<16x128xf32>
      %444 = arith.mulf %437, %16 : vector<16x128xf32>
      %445 = arith.addf %443, %444 : vector<16x128xf32>
      %446 = arith.mulf %14, %445 : vector<16x128xf32>
      %447 = arith.addf %446, %20 : vector<16x128xf32>
      %448 = arith.subf %445, %447 : vector<16x128xf32>
      %cst_164 = arith.constant 0.000000e+00 : f32
      %449 = vector.broadcast %cst_164 : f32 to vector<16x128xf32>
      %450 = arith.maximumf %448, %449 : vector<16x128xf32>
      %451 = arith.addf %435, %440 : vector<16x128xf32>
      %452 = arith.addf %451, %447 : vector<16x128xf32>
      %c3_i32_165 = arith.constant 3 : i32
      %453 = arith.addi %c3_i32_165, %406 : i32
      %454 = arith.index_cast %453 : i32 to index
      %c0_166 = arith.constant 0 : index
      %c0_167 = arith.constant 0 : index
      %455 = vector.load %arg10[%454, %c0_166, %c0_167] : memref<35x16x128xf32, #tpu.memory_space<vmem>>, vector<1x16x128xf32>
      %456 = vector.shape_cast %455 : vector<1x16x128xf32> to vector<16x128xf32>
      %457 = vector.shape_cast %452 : vector<16x128xf32> to vector<1x16x128xf32>
      tpu.vector_store %arg10[%454, %c0_166, %c0_167], %457 {strides = array<i32>} : memref<35x16x128xf32, #tpu.memory_space<vmem>>, vector<1x16x128xf32>,
      %c6_i32 = arith.constant 6 : i32
      %458 = arith.addi %139, %c6_i32 : i32
      %459 = vector.extract_strided_slice %141 {offsets = [6, 0], sizes = [1, 128], strides = [1, 1]} : vector<8x128xf32> to vector<1x128xf32>
      %460 = vector.extract_strided_slice %143 {offsets = [6, 0], sizes = [1, 128], strides = [1, 1]} : vector<8x128xf32> to vector<1x128xf32>
      %461 = vector.extract_strided_slice %145 {offsets = [6, 0], sizes = [1, 128], strides = [1, 1]} : vector<8x128xf32> to vector<1x128xf32>
      %462 = arith.index_cast %458 : i32 to index
      %c0_168 = arith.constant 0 : index
      %c0_169 = arith.constant 0 : index
      %463 = vector.load %arg5[%462, %c0_168, %c0_169] : memref<32x16x128xbf16, #tpu.memory_space<vmem>>, vector<1x16x128xbf16>
      %464 = vector.shape_cast %463 : vector<1x16x128xbf16> to vector<16x128xbf16>
      %465 = arith.extf %464 : vector<16x128xbf16> to vector<16x128xf32>
      %cst_170 = arith.constant 5.000000e+00 : f32
      %466 = vector.broadcast %cst_170 : f32 to vector<16x128xf32>
      %467 = arith.mulf %465, %466 : vector<16x128xf32>
      %468 = math.exp %467 : vector<16x128xf32>
      %469 = vector.broadcast %459 : vector<1x128xf32> to vector<16x128xf32>
      %470 = arith.addf %422, %469 : vector<16x128xf32>
      %471 = arith.minimumf %470, %468 : vector<16x128xf32>
      %472 = arith.subf %470, %471 : vector<16x128xf32>
      %cst_171 = arith.constant 0.000000e+00 : f32
      %473 = vector.broadcast %cst_171 : f32 to vector<16x128xf32>
      %474 = arith.maximumf %472, %473 : vector<16x128xf32>
      %475 = vector.broadcast %460 : vector<1x128xf32> to vector<16x128xf32>
      %476 = arith.mulf %475, %26 : vector<16x128xf32>
      %477 = arith.addf %439, %476 : vector<16x128xf32>
      %478 = arith.addf %477, %471 : vector<16x128xf32>
      %479 = vector.broadcast %461 : vector<1x128xf32> to vector<16x128xf32>
      %480 = arith.mulf %479, %24 : vector<16x128xf32>
      %481 = arith.subf %478, %480 : vector<16x128xf32>
      %cst_172 = arith.constant 0.000000e+00 : f32
      %482 = vector.broadcast %cst_172 : f32 to vector<16x128xf32>
      %483 = arith.maximumf %481, %482 : vector<16x128xf32>
      %484 = arith.subf %483, %18 : vector<16x128xf32>
      %485 = arith.mulf %10, %484 : vector<16x128xf32>
      %cst_173 = arith.constant 0.000000e+00 : f32
      %486 = vector.broadcast %cst_173 : f32 to vector<16x128xf32>
      %487 = arith.maximumf %485, %486 : vector<16x128xf32>
      %488 = arith.minimumf %483, %18 : vector<16x128xf32>
      %489 = arith.mulf %12, %488 : vector<16x128xf32>
      %490 = arith.subf %483, %487 : vector<16x128xf32>
      %491 = arith.subf %490, %489 : vector<16x128xf32>
      %492 = arith.mulf %489, %28 : vector<16x128xf32>
      %493 = vector.broadcast %460 : vector<1x128xf32> to vector<16x128xf32>
      %494 = arith.mulf %493, %22 : vector<16x128xf32>
      %495 = arith.addf %450, %494 : vector<16x128xf32>
      %496 = arith.mulf %489, %16 : vector<16x128xf32>
      %497 = arith.addf %495, %496 : vector<16x128xf32>
      %498 = arith.mulf %14, %497 : vector<16x128xf32>
      %499 = arith.addf %498, %20 : vector<16x128xf32>
      %500 = arith.subf %497, %499 : vector<16x128xf32>
      %cst_174 = arith.constant 0.000000e+00 : f32
      %501 = vector.broadcast %cst_174 : f32 to vector<16x128xf32>
      %502 = arith.maximumf %500, %501 : vector<16x128xf32>
      %503 = arith.addf %487, %492 : vector<16x128xf32>
      %504 = arith.addf %503, %499 : vector<16x128xf32>
      %c3_i32_175 = arith.constant 3 : i32
      %505 = arith.addi %c3_i32_175, %458 : i32
      %506 = arith.index_cast %505 : i32 to index
      %c0_176 = arith.constant 0 : index
      %c0_177 = arith.constant 0 : index
      %507 = vector.load %arg10[%506, %c0_176, %c0_177] : memref<35x16x128xf32, #tpu.memory_space<vmem>>, vector<1x16x128xf32>
      %508 = vector.shape_cast %507 : vector<1x16x128xf32> to vector<16x128xf32>
      %509 = vector.shape_cast %504 : vector<16x128xf32> to vector<1x16x128xf32>
      tpu.vector_store %arg10[%506, %c0_176, %c0_177], %509 {strides = array<i32>} : memref<35x16x128xf32, #tpu.memory_space<vmem>>, vector<1x16x128xf32>,
      %c7_i32 = arith.constant 7 : i32
      %510 = arith.addi %139, %c7_i32 : i32
      %511 = vector.extract_strided_slice %141 {offsets = [7, 0], sizes = [1, 128], strides = [1, 1]} : vector<8x128xf32> to vector<1x128xf32>
      %512 = vector.extract_strided_slice %143 {offsets = [7, 0], sizes = [1, 128], strides = [1, 1]} : vector<8x128xf32> to vector<1x128xf32>
      %513 = vector.extract_strided_slice %145 {offsets = [7, 0], sizes = [1, 128], strides = [1, 1]} : vector<8x128xf32> to vector<1x128xf32>
      %514 = arith.index_cast %510 : i32 to index
      %c0_178 = arith.constant 0 : index
      %c0_179 = arith.constant 0 : index
      %515 = vector.load %arg5[%514, %c0_178, %c0_179] : memref<32x16x128xbf16, #tpu.memory_space<vmem>>, vector<1x16x128xbf16>
      %516 = vector.shape_cast %515 : vector<1x16x128xbf16> to vector<16x128xbf16>
      %517 = arith.extf %516 : vector<16x128xbf16> to vector<16x128xf32>
      %cst_180 = arith.constant 5.000000e+00 : f32
      %518 = vector.broadcast %cst_180 : f32 to vector<16x128xf32>
      %519 = arith.mulf %517, %518 : vector<16x128xf32>
      %520 = math.exp %519 : vector<16x128xf32>
      %521 = vector.broadcast %511 : vector<1x128xf32> to vector<16x128xf32>
      %522 = arith.addf %474, %521 : vector<16x128xf32>
      %523 = arith.minimumf %522, %520 : vector<16x128xf32>
      %524 = arith.subf %522, %523 : vector<16x128xf32>
      %cst_181 = arith.constant 0.000000e+00 : f32
      %525 = vector.broadcast %cst_181 : f32 to vector<16x128xf32>
      %526 = arith.maximumf %524, %525 : vector<16x128xf32>
      %527 = vector.broadcast %512 : vector<1x128xf32> to vector<16x128xf32>
      %528 = arith.mulf %527, %26 : vector<16x128xf32>
      %529 = arith.addf %491, %528 : vector<16x128xf32>
      %530 = arith.addf %529, %523 : vector<16x128xf32>
      %531 = vector.broadcast %513 : vector<1x128xf32> to vector<16x128xf32>
      %532 = arith.mulf %531, %24 : vector<16x128xf32>
      %533 = arith.subf %530, %532 : vector<16x128xf32>
      %cst_182 = arith.constant 0.000000e+00 : f32
      %534 = vector.broadcast %cst_182 : f32 to vector<16x128xf32>
      %535 = arith.maximumf %533, %534 : vector<16x128xf32>
      %536 = arith.subf %535, %18 : vector<16x128xf32>
      %537 = arith.mulf %10, %536 : vector<16x128xf32>
      %cst_183 = arith.constant 0.000000e+00 : f32
      %538 = vector.broadcast %cst_183 : f32 to vector<16x128xf32>
      %539 = arith.maximumf %537, %538 : vector<16x128xf32>
      %540 = arith.minimumf %535, %18 : vector<16x128xf32>
      %541 = arith.mulf %12, %540 : vector<16x128xf32>
      %542 = arith.subf %535, %539 : vector<16x128xf32>
      %543 = arith.subf %542, %541 : vector<16x128xf32>
      %544 = arith.mulf %541, %28 : vector<16x128xf32>
      %545 = vector.broadcast %512 : vector<1x128xf32> to vector<16x128xf32>
      %546 = arith.mulf %545, %22 : vector<16x128xf32>
      %547 = arith.addf %502, %546 : vector<16x128xf32>
      %548 = arith.mulf %541, %16 : vector<16x128xf32>
      %549 = arith.addf %547, %548 : vector<16x128xf32>
      %550 = arith.mulf %14, %549 : vector<16x128xf32>
      %551 = arith.addf %550, %20 : vector<16x128xf32>
      %552 = arith.subf %549, %551 : vector<16x128xf32>
      %cst_184 = arith.constant 0.000000e+00 : f32
      %553 = vector.broadcast %cst_184 : f32 to vector<16x128xf32>
      %554 = arith.maximumf %552, %553 : vector<16x128xf32>
      %555 = arith.addf %539, %544 : vector<16x128xf32>
      %556 = arith.addf %555, %551 : vector<16x128xf32>
      %c3_i32_185 = arith.constant 3 : i32
      %557 = arith.addi %c3_i32_185, %510 : i32
      %558 = arith.index_cast %557 : i32 to index
      %c0_186 = arith.constant 0 : index
      %c0_187 = arith.constant 0 : index
      %559 = vector.load %arg10[%558, %c0_186, %c0_187] : memref<35x16x128xf32, #tpu.memory_space<vmem>>, vector<1x16x128xf32>
      %560 = vector.shape_cast %559 : vector<1x16x128xf32> to vector<16x128xf32>
      %561 = vector.shape_cast %556 : vector<16x128xf32> to vector<1x16x128xf32>
      tpu.vector_store %arg10[%558, %c0_186, %c0_187], %561 {strides = array<i32>} : memref<35x16x128xf32, #tpu.memory_space<vmem>>, vector<1x16x128xf32>,
      scf.yield %526, %543, %554 : vector<16x128xf32>, vector<16x128xf32>, vector<16x128xf32>
    }
    %c4_i32_32 = arith.constant 4 : i32
    %c0_33 = arith.constant 0 : index
    %c0_34 = arith.constant 0 : index
    %c0_35 = arith.constant 0 : index
    %37 = vector.load %arg9[%c0_33, %c0_34, %c0_35] : memref<3x16x128xf32, #tpu.memory_space<vmem>>, vector<1x16x128xf32>
    %38 = vector.shape_cast %37 : vector<1x16x128xf32> to vector<16x128xf32>
    %39 = vector.shape_cast %36#0 : vector<16x128xf32> to vector<1x16x128xf32>
    tpu.vector_store %arg9[%c0_33, %c0_34, %c0_35], %39 {strides = array<i32>} : memref<3x16x128xf32, #tpu.memory_space<vmem>>, vector<1x16x128xf32>,
    %c1_36 = arith.constant 1 : index
    %c0_37 = arith.constant 0 : index
    %c0_38 = arith.constant 0 : index
    %40 = vector.load %arg9[%c1_36, %c0_37, %c0_38] : memref<3x16x128xf32, #tpu.memory_space<vmem>>, vector<1x16x128xf32>
    %41 = vector.shape_cast %40 : vector<1x16x128xf32> to vector<16x128xf32>
    %42 = vector.shape_cast %36#1 : vector<16x128xf32> to vector<1x16x128xf32>
    tpu.vector_store %arg9[%c1_36, %c0_37, %c0_38], %42 {strides = array<i32>} : memref<3x16x128xf32, #tpu.memory_space<vmem>>, vector<1x16x128xf32>,
    %c2_39 = arith.constant 2 : index
    %c0_40 = arith.constant 0 : index
    %c0_41 = arith.constant 0 : index
    %43 = vector.load %arg9[%c2_39, %c0_40, %c0_41] : memref<3x16x128xf32, #tpu.memory_space<vmem>>, vector<1x16x128xf32>
    %44 = vector.shape_cast %43 : vector<1x16x128xf32> to vector<16x128xf32>
    %45 = vector.shape_cast %36#2 : vector<16x128xf32> to vector<1x16x128xf32>
    tpu.vector_store %arg9[%c2_39, %c0_40, %c0_41], %45 {strides = array<i32>} : memref<3x16x128xf32, #tpu.memory_space<vmem>>, vector<1x16x128xf32>,
    %c0_42 = arith.constant 0 : index
    %c0_43 = arith.constant 0 : index
    %c0_44 = arith.constant 0 : index
    %46 = vector.load %arg7[%c0_42, %c0_43, %c0_44] : memref<4x16x128xf32, #tpu.memory_space<vmem>>, vector<1x16x128xf32>
    %47 = vector.shape_cast %46 : vector<1x16x128xf32> to vector<16x128xf32>
    %c1_45 = arith.constant 1 : index
    %c0_46 = arith.constant 0 : index
    %c0_47 = arith.constant 0 : index
    %48 = vector.load %arg7[%c1_45, %c0_46, %c0_47] : memref<4x16x128xf32, #tpu.memory_space<vmem>>, vector<1x16x128xf32>
    %49 = vector.shape_cast %48 : vector<1x16x128xf32> to vector<16x128xf32>
    %c2_48 = arith.constant 2 : index
    %c0_49 = arith.constant 0 : index
    %c0_50 = arith.constant 0 : index
    %50 = vector.load %arg7[%c2_48, %c0_49, %c0_50] : memref<4x16x128xf32, #tpu.memory_space<vmem>>, vector<1x16x128xf32>
    %51 = vector.shape_cast %50 : vector<1x16x128xf32> to vector<16x128xf32>
    %c3_51 = arith.constant 3 : index
    %c0_52 = arith.constant 0 : index
    %c0_53 = arith.constant 0 : index
    %52 = vector.load %arg7[%c3_51, %c0_52, %c0_53] : memref<4x16x128xf32, #tpu.memory_space<vmem>>, vector<1x16x128xf32>
    %53 = vector.shape_cast %52 : vector<1x16x128xf32> to vector<16x128xf32>
    %c0_54 = arith.constant 0 : index
    %c0_55 = arith.constant 0 : index
    %c0_56 = arith.constant 0 : index
    %54 = vector.load %arg10[%c0_54, %c0_55, %c0_56] : memref<35x16x128xf32, #tpu.memory_space<vmem>>, vector<8x16x128xf32>
    %55 = vector.shape_cast %47 : vector<16x128xf32> to vector<1x16x128xf32>
    %56 = vector.broadcast %55 : vector<1x16x128xf32> to vector<8x16x128xf32>
    %57 = arith.mulf %56, %54 : vector<8x16x128xf32>
    %c1_57 = arith.constant 1 : index
    %c0_58 = arith.constant 0 : index
    %c0_59 = arith.constant 0 : index
    %58 = vector.load %arg10[%c1_57, %c0_58, %c0_59] : memref<35x16x128xf32, #tpu.memory_space<vmem>>, vector<8x16x128xf32>
    %59 = vector.shape_cast %49 : vector<16x128xf32> to vector<1x16x128xf32>
    %60 = vector.broadcast %59 : vector<1x16x128xf32> to vector<8x16x128xf32>
    %61 = arith.mulf %60, %58 : vector<8x16x128xf32>
    %62 = arith.addf %57, %61 : vector<8x16x128xf32>
    %c2_60 = arith.constant 2 : index
    %c0_61 = arith.constant 0 : index
    %c0_62 = arith.constant 0 : index
    %63 = vector.load %arg10[%c2_60, %c0_61, %c0_62] : memref<35x16x128xf32, #tpu.memory_space<vmem>>, vector<8x16x128xf32>
    %64 = vector.shape_cast %51 : vector<16x128xf32> to vector<1x16x128xf32>
    %65 = vector.broadcast %64 : vector<1x16x128xf32> to vector<8x16x128xf32>
    %66 = arith.mulf %65, %63 : vector<8x16x128xf32>
    %67 = arith.addf %62, %66 : vector<8x16x128xf32>
    %c3_63 = arith.constant 3 : index
    %c0_64 = arith.constant 0 : index
    %c0_65 = arith.constant 0 : index
    %68 = vector.load %arg10[%c3_63, %c0_64, %c0_65] : memref<35x16x128xf32, #tpu.memory_space<vmem>>, vector<8x16x128xf32>
    %69 = vector.shape_cast %53 : vector<16x128xf32> to vector<1x16x128xf32>
    %70 = vector.broadcast %69 : vector<1x16x128xf32> to vector<8x16x128xf32>
    %71 = arith.mulf %70, %68 : vector<8x16x128xf32>
    %72 = arith.addf %67, %71 : vector<8x16x128xf32>
    %cst_66 = arith.constant dense<0.000000e+00> : vector<8x128xf32>
    %73 = vector.multi_reduction <add>, %72, %cst_66 [1] : vector<8x16x128xf32> to vector<8x128xf32>
    %c0_67 = arith.constant 0 : index
    %c0_68 = arith.constant 0 : index
    %74 = vector.load %arg8[%c0_67, %c0_68] : memref<32x128xf32, #tpu.memory_space<vmem>>, vector<8x128xf32>
    tpu.vector_store %arg8[%c0_67, %c0_68], %73 {strides = array<i32>} : memref<32x128xf32, #tpu.memory_space<vmem>>, vector<8x128xf32>,
    %c8 = arith.constant 8 : index
    %c0_69 = arith.constant 0 : index
    %c0_70 = arith.constant 0 : index
    %75 = vector.load %arg10[%c8, %c0_69, %c0_70] : memref<35x16x128xf32, #tpu.memory_space<vmem>>, vector<8x16x128xf32>
    %76 = vector.shape_cast %47 : vector<16x128xf32> to vector<1x16x128xf32>
    %77 = vector.broadcast %76 : vector<1x16x128xf32> to vector<8x16x128xf32>
    %78 = arith.mulf %77, %75 : vector<8x16x128xf32>
    %c9 = arith.constant 9 : index
    %c0_71 = arith.constant 0 : index
    %c0_72 = arith.constant 0 : index
    %79 = vector.load %arg10[%c9, %c0_71, %c0_72] : memref<35x16x128xf32, #tpu.memory_space<vmem>>, vector<8x16x128xf32>
    %80 = vector.shape_cast %49 : vector<16x128xf32> to vector<1x16x128xf32>
    %81 = vector.broadcast %80 : vector<1x16x128xf32> to vector<8x16x128xf32>
    %82 = arith.mulf %81, %79 : vector<8x16x128xf32>
    %83 = arith.addf %78, %82 : vector<8x16x128xf32>
    %c10 = arith.constant 10 : index
    %c0_73 = arith.constant 0 : index
    %c0_74 = arith.constant 0 : index
    %84 = vector.load %arg10[%c10, %c0_73, %c0_74] : memref<35x16x128xf32, #tpu.memory_space<vmem>>, vector<8x16x128xf32>
    %85 = vector.shape_cast %51 : vector<16x128xf32> to vector<1x16x128xf32>
    %86 = vector.broadcast %85 : vector<1x16x128xf32> to vector<8x16x128xf32>
    %87 = arith.mulf %86, %84 : vector<8x16x128xf32>
    %88 = arith.addf %83, %87 : vector<8x16x128xf32>
    %c11 = arith.constant 11 : index
    %c0_75 = arith.constant 0 : index
    %c0_76 = arith.constant 0 : index
    %89 = vector.load %arg10[%c11, %c0_75, %c0_76] : memref<35x16x128xf32, #tpu.memory_space<vmem>>, vector<8x16x128xf32>
    %90 = vector.shape_cast %53 : vector<16x128xf32> to vector<1x16x128xf32>
    %91 = vector.broadcast %90 : vector<1x16x128xf32> to vector<8x16x128xf32>
    %92 = arith.mulf %91, %89 : vector<8x16x128xf32>
    %93 = arith.addf %88, %92 : vector<8x16x128xf32>
    %cst_77 = arith.constant dense<0.000000e+00> : vector<8x128xf32>
    %94 = vector.multi_reduction <add>, %93, %cst_77 [1] : vector<8x16x128xf32> to vector<8x128xf32>
    %c8_78 = arith.constant 8 : index
    %c0_79 = arith.constant 0 : index
    %95 = vector.load %arg8[%c8_78, %c0_79] : memref<32x128xf32, #tpu.memory_space<vmem>>, vector<8x128xf32>
    tpu.vector_store %arg8[%c8_78, %c0_79], %94 {strides = array<i32>} : memref<32x128xf32, #tpu.memory_space<vmem>>, vector<8x128xf32>,
    %c16 = arith.constant 16 : index
    %c0_80 = arith.constant 0 : index
    %c0_81 = arith.constant 0 : index
    %96 = vector.load %arg10[%c16, %c0_80, %c0_81] : memref<35x16x128xf32, #tpu.memory_space<vmem>>, vector<8x16x128xf32>
    %97 = vector.shape_cast %47 : vector<16x128xf32> to vector<1x16x128xf32>
    %98 = vector.broadcast %97 : vector<1x16x128xf32> to vector<8x16x128xf32>
    %99 = arith.mulf %98, %96 : vector<8x16x128xf32>
    %c17 = arith.constant 17 : index
    %c0_82 = arith.constant 0 : index
    %c0_83 = arith.constant 0 : index
    %100 = vector.load %arg10[%c17, %c0_82, %c0_83] : memref<35x16x128xf32, #tpu.memory_space<vmem>>, vector<8x16x128xf32>
    %101 = vector.shape_cast %49 : vector<16x128xf32> to vector<1x16x128xf32>
    %102 = vector.broadcast %101 : vector<1x16x128xf32> to vector<8x16x128xf32>
    %103 = arith.mulf %102, %100 : vector<8x16x128xf32>
    %104 = arith.addf %99, %103 : vector<8x16x128xf32>
    %c18 = arith.constant 18 : index
    %c0_84 = arith.constant 0 : index
    %c0_85 = arith.constant 0 : index
    %105 = vector.load %arg10[%c18, %c0_84, %c0_85] : memref<35x16x128xf32, #tpu.memory_space<vmem>>, vector<8x16x128xf32>
    %106 = vector.shape_cast %51 : vector<16x128xf32> to vector<1x16x128xf32>
    %107 = vector.broadcast %106 : vector<1x16x128xf32> to vector<8x16x128xf32>
    %108 = arith.mulf %107, %105 : vector<8x16x128xf32>
    %109 = arith.addf %104, %108 : vector<8x16x128xf32>
    %c19 = arith.constant 19 : index
    %c0_86 = arith.constant 0 : index
    %c0_87 = arith.constant 0 : index
    %110 = vector.load %arg10[%c19, %c0_86, %c0_87] : memref<35x16x128xf32, #tpu.memory_space<vmem>>, vector<8x16x128xf32>
    %111 = vector.shape_cast %53 : vector<16x128xf32> to vector<1x16x128xf32>
    %112 = vector.broadcast %111 : vector<1x16x128xf32> to vector<8x16x128xf32>
    %113 = arith.mulf %112, %110 : vector<8x16x128xf32>
    %114 = arith.addf %109, %113 : vector<8x16x128xf32>
    %cst_88 = arith.constant dense<0.000000e+00> : vector<8x128xf32>
    %115 = vector.multi_reduction <add>, %114, %cst_88 [1] : vector<8x16x128xf32> to vector<8x128xf32>
    %c16_89 = arith.constant 16 : index
    %c0_90 = arith.constant 0 : index
    %116 = vector.load %arg8[%c16_89, %c0_90] : memref<32x128xf32, #tpu.memory_space<vmem>>, vector<8x128xf32>
    tpu.vector_store %arg8[%c16_89, %c0_90], %115 {strides = array<i32>} : memref<32x128xf32, #tpu.memory_space<vmem>>, vector<8x128xf32>,
    %c24 = arith.constant 24 : index
    %c0_91 = arith.constant 0 : index
    %c0_92 = arith.constant 0 : index
    %117 = vector.load %arg10[%c24, %c0_91, %c0_92] : memref<35x16x128xf32, #tpu.memory_space<vmem>>, vector<8x16x128xf32>
    %118 = vector.shape_cast %47 : vector<16x128xf32> to vector<1x16x128xf32>
    %119 = vector.broadcast %118 : vector<1x16x128xf32> to vector<8x16x128xf32>
    %120 = arith.mulf %119, %117 : vector<8x16x128xf32>
    %c25 = arith.constant 25 : index
    %c0_93 = arith.constant 0 : index
    %c0_94 = arith.constant 0 : index
    %121 = vector.load %arg10[%c25, %c0_93, %c0_94] : memref<35x16x128xf32, #tpu.memory_space<vmem>>, vector<8x16x128xf32>
    %122 = vector.shape_cast %49 : vector<16x128xf32> to vector<1x16x128xf32>
    %123 = vector.broadcast %122 : vector<1x16x128xf32> to vector<8x16x128xf32>
    %124 = arith.mulf %123, %121 : vector<8x16x128xf32>
    %125 = arith.addf %120, %124 : vector<8x16x128xf32>
    %c26 = arith.constant 26 : index
    %c0_95 = arith.constant 0 : index
    %c0_96 = arith.constant 0 : index
    %126 = vector.load %arg10[%c26, %c0_95, %c0_96] : memref<35x16x128xf32, #tpu.memory_space<vmem>>, vector<8x16x128xf32>
    %127 = vector.shape_cast %51 : vector<16x128xf32> to vector<1x16x128xf32>
    %128 = vector.broadcast %127 : vector<1x16x128xf32> to vector<8x16x128xf32>
    %129 = arith.mulf %128, %126 : vector<8x16x128xf32>
    %130 = arith.addf %125, %129 : vector<8x16x128xf32>
    %c27 = arith.constant 27 : index
    %c0_97 = arith.constant 0 : index
    %c0_98 = arith.constant 0 : index
    %131 = vector.load %arg10[%c27, %c0_97, %c0_98] : memref<35x16x128xf32, #tpu.memory_space<vmem>>, vector<8x16x128xf32>
    %132 = vector.shape_cast %53 : vector<16x128xf32> to vector<1x16x128xf32>
    %133 = vector.broadcast %132 : vector<1x16x128xf32> to vector<8x16x128xf32>
    %134 = arith.mulf %133, %131 : vector<8x16x128xf32>
    %135 = arith.addf %130, %134 : vector<8x16x128xf32>
    %cst_99 = arith.constant dense<0.000000e+00> : vector<8x128xf32>
    %136 = vector.multi_reduction <add>, %135, %cst_99 [1] : vector<8x16x128xf32> to vector<8x128xf32>
    %c24_100 = arith.constant 24 : index
    %c0_101 = arith.constant 0 : index
    %137 = vector.load %arg8[%c24_100, %c0_101] : memref<32x128xf32, #tpu.memory_space<vmem>>, vector<8x128xf32>
    tpu.vector_store %arg8[%c24_100, %c0_101], %136 {strides = array<i32>} : memref<32x128xf32, #tpu.memory_space<vmem>>, vector<8x128xf32>,
    return
  }
  func.func @transform_0(%arg0: i32, %arg1: i32) -> (i32, i32) {
    %c0_i32 = arith.constant 0 : i32
    return %arg1, %arg0 : i32, i32
  }
  func.func @transform_1(%arg0: i32, %arg1: i32) -> (i32, i32) {
    %c0_i32 = arith.constant 0 : i32
    return %arg1, %arg0 : i32, i32
  }
  func.func @transform_2(%arg0: i32, %arg1: i32) -> (i32, i32) {
    %c0_i32 = arith.constant 0 : i32
    return %arg1, %arg0 : i32, i32
  }
  func.func @transform_3(%arg0: i32, %arg1: i32) -> (i32, i32, i32) {
    %c0_i32 = arith.constant 0 : i32
    %c0_i32_0 = arith.constant 0 : i32
    return %arg1, %c0_i32, %arg0 : i32, i32, i32
  }
  func.func @transform_4(%arg0: i32, %arg1: i32) -> (i32, i32, i32) {
    %c0_i32 = arith.constant 0 : i32
    %c0_i32_0 = arith.constant 0 : i32
    %c0_i32_1 = arith.constant 0 : i32
    return %c0_i32, %c0_i32_0, %arg0 : i32, i32, i32
  }
  func.func @transform_5(%arg0: i32, %arg1: i32) -> (i32, i32, i32) {
    %c0_i32 = arith.constant 0 : i32
    %c0_i32_0 = arith.constant 0 : i32
    %c0_i32_1 = arith.constant 0 : i32
    return %c0_i32, %c0_i32_0, %arg0 : i32, i32, i32
  }
  func.func @transform_6(%arg0: i32, %arg1: i32) -> (i32, i32) {
    %c0_i32 = arith.constant 0 : i32
    return %arg1, %arg0 : i32, i32
  }
}

</mosaic_0001>

<llo_original>
// kernel: waternet0313_forward.1
$region0: #{waternet0313_forward.1}
  #allocation0 [shape = 'u32[]', space=smem, size = 0x4, offset = 0x4, fixed_abs, tag = 'smem constant byte address 0x4 - core index']
  #allocation1 [shape = 'u32[144,128]{1,0:T(1,128)}', space=vmem, size = 0x12000, scoped, tag = 'internal scratch']
  #allocation2 [shape = 'f32[3,16,128]{2,1,0:T(8,128)}', space=vmem, size = 0x6000, scoped, tag = 'scratch operand']
  #allocation3 [shape = 'f32[35,16,128]{2,1,0:T(8,128)}', space=vmem, size = 0x46000, scoped, tag = 'scratch operand']
  %s0 = inlined_call_operand.vmem [shape: f32[32,128], index: 0, kind: input, shape index: {}]
  %s1 = inlined_call_operand.vmem [shape: f32[32,128], index: 1, kind: input, shape index: {}]
  %s2 = inlined_call_operand.vmem [shape: f32[32,128], index: 2, kind: input, shape index: {}]
  %s3 = inlined_call_operand.vmem [shape: bf16[32,16,128], index: 3, kind: input, shape index: {}]
  %s4 = inlined_call_operand.vmem [shape: f32[8,16,128], index: 4, kind: input, shape index: {}]
  %s5 = inlined_call_operand.vmem [shape: f32[4,16,128], index: 5, kind: input, shape index: {}]
  %s6 = inlined_call_operand.vmem [shape: f32[32,128], index: 6, kind: output, shape index: {}]
  %s7 = sld [smem:[#allocation0]]
  $region49: #{waternet0313_forward.1} parent=0
    _
  %s9 = ssub.s32 1, %s7
  %s10 = scalar_select 0, %s9, %s7
  // Predicated region
  $region2: #{waternet0313_forward.1} parent=0 // pred_check
    _
  $region3: #{waternet0313_forward.1} parent=0 // pred_check_branch
    %12 = sbr.rel (0) target = $region5
  $region4: #{waternet0313_forward.1} parent=0 // pred_region
    _
  $region5: #{waternet0313_forward.1} parent=0 // pred_fallthru
    _
  // Predicated region
  $region6: #{waternet0313_forward.1} parent=0 // pred_check
    _
  $region7: #{waternet0313_forward.1} parent=0 // pred_check_branch
    %14 = sbr.rel (0) target = $region9
  $region8: #{waternet0313_forward.1} parent=0 // pred_region
    _
  $region9: #{waternet0313_forward.1} parent=0 // pred_fallthru
    _
  // Predicated region
  $region10: #{waternet0313_forward.1} parent=0 // pred_check
    _
  $region11: #{waternet0313_forward.1} parent=0 // pred_check_branch
    %16 = sbr.rel (0) target = $region13
  $region12: #{waternet0313_forward.1} parent=0 // pred_region
    _
  $region13: #{waternet0313_forward.1} parent=0 // pred_fallthru
    _
  // Predicated region
  $region14: #{waternet0313_forward.1} parent=0 // pred_check
    _
  $region15: #{waternet0313_forward.1} parent=0 // pred_check_branch
    %18 = sbr.rel (0) target = $region17
  $region16: #{waternet0313_forward.1} parent=0 // pred_region
    _
  $region17: #{waternet0313_forward.1} parent=0 // pred_fallthru
    _
  // Predicated region
  $region18: #{waternet0313_forward.1} parent=0 // pred_check
    _
  $region19: #{waternet0313_forward.1} parent=0 // pred_check_branch
    %20 = sbr.rel (0) target = $region21
  $region20: #{waternet0313_forward.1} parent=0 // pred_region
    _
  $region21: #{waternet0313_forward.1} parent=0 // pred_fallthru
    _
  // Predicated region
  $region22: #{waternet0313_forward.1} parent=0 // pred_check
    _
  $region23: #{waternet0313_forward.1} parent=0 // pred_check_branch
    %22 = sbr.rel (0) target = $region25
  $region24: #{waternet0313_forward.1} parent=0 // pred_region
    _
  $region25: #{waternet0313_forward.1} parent=0 // pred_fallthru
    _
  %p23 = scmp.eq.s32.totalorder 0, 0
  // Predicated region
  $region26: #{waternet0313_forward.1} parent=0 // pred_check
    %p24 = pneg %p23
  $region27: #{waternet0313_forward.1} parent=0 // pred_check_branch
    %26 = sbr.rel (%p24) target = $region29
  $region28: #{waternet0313_forward.1} parent=0 // pred_region
    %27 = vst [vmem:[#allocation2] sm:$0xff] 0.0
    %28 = vst [vmem:[#allocation2 + $0x8] sm:$0xff] 0.0
    %29 = vst [vmem:[#allocation2 + $0x10] sm:$0xff] 0.0
    %30 = vst [vmem:[#allocation2 + $0x18] sm:$0xff] 0.0
    %31 = vst [vmem:[#allocation2 + $0x20] sm:$0xff] 0.0
    %32 = vst [vmem:[#allocation2 + $0x28] sm:$0xff] 0.0
    %33 = vst [vmem:[#allocation3] sm:$0xff] 0.0
    %34 = vst [vmem:[#allocation3 + $0x8] sm:$0xff] 0.0
    %35 = vst [vmem:[#allocation3 + $0x10] sm:$0xff] 0.0
    %36 = vst [vmem:[#allocation3 + $0x18] sm:$0xff] 0.0
    %37 = vst [vmem:[#allocation3 + $0x20] sm:$0xff] 0.0
    %38 = vst [vmem:[#allocation3 + $0x28] sm:$0xff] 0.0
  $region29: #{waternet0313_forward.1} parent=0 // pred_fallthru
    _
  %p39 = scmp.gt.s32.totalorder 0, 0
  // Predicated region
  $region30: #{waternet0313_forward.1} parent=0 // pred_check
    %p40 = pneg %p39
  $region31: #{waternet0313_forward.1} parent=0 // pred_check_branch
    %42 = sbr.rel (%p40) target = $region33
  $region32: #{waternet0313_forward.1} parent=0 // pred_region
    %s43 = scalar_lea.vmem [#allocation3], 512
    %v44 = vld [vmem:[%s43] sm:$0xff]
    %v45 = vld [vmem:[%s43 + $0x8] sm:$0xff]
    %v46 = vld [vmem:[%s43 + $0x10] sm:$0xff]
    %v47 = vld [vmem:[%s43 + $0x18] sm:$0xff]
    %v48 = vld [vmem:[%s43 + $0x20] sm:$0xff]
    %v49 = vld [vmem:[%s43 + $0x28] sm:$0xff]
    %50 = vst [vmem:[#allocation3] sm:$0xff] %v44
    %51 = vst [vmem:[#allocation3 + $0x8] sm:$0xff] %v45
    %52 = vst [vmem:[#allocation3 + $0x10] sm:$0xff] %v46
    %53 = vst [vmem:[#allocation3 + $0x18] sm:$0xff] %v47
    %54 = vst [vmem:[#allocation3 + $0x20] sm:$0xff] %v48
    %55 = vst [vmem:[#allocation3 + $0x28] sm:$0xff] %v49
  $region33: #{waternet0313_forward.1} parent=0 // pred_fallthru
    _
  %v56 = vld [vmem:[%s4] sm:$0xff]
  %v57 = vld [vmem:[%s4 + $0x8] sm:$0xff]
  %s58 = scalar_lea.vmem %s4, 16
  %v59 = vld [vmem:[%s58] sm:$0xff]
  %v60 = vld [vmem:[%s58 + $0x8] sm:$0xff]
  %s61 = scalar_lea.vmem %s4, 32
  %v62 = vld [vmem:[%s61] sm:$0xff]
  %v63 = vld [vmem:[%s61 + $0x8] sm:$0xff]
  %s64 = scalar_lea.vmem %s4, 48
  %v65 = vld [vmem:[%s64] sm:$0xff]
  %v66 = vld [vmem:[%s64 + $0x8] sm:$0xff]
  %s67 = scalar_lea.vmem %s4, 64
  %v68 = vld [vmem:[%s67] sm:$0xff]
  %v69 = vld [vmem:[%s67 + $0x8] sm:$0xff]
  %s70 = scalar_lea.vmem %s4, 80
  %v71 = vld [vmem:[%s70] sm:$0xff]
  %v72 = vld [vmem:[%s70 + $0x8] sm:$0xff]
  %s73 = scalar_lea.vmem %s4, 96
  %v74 = vld [vmem:[%s73] sm:$0xff]
  %v75 = vld [vmem:[%s73 + $0x8] sm:$0xff]
  %s76 = scalar_lea.vmem %s4, 112
  %v77 = vld [vmem:[%s76] sm:$0xff]
  %v78 = vld [vmem:[%s76 + $0x8] sm:$0xff]
  %v79 = vsub.f32 1.0, %v74
  %v80 = vsub.f32 1.0, %v75
  %v81 = vsub.f32 1.0, %v65
  %v82 = vsub.f32 1.0, %v66
  %v83 = vld [vmem:[#allocation2] sm:$0xff]
  %v84 = vld [vmem:[#allocation2 + $0x8] sm:$0xff]
  %s85 = scalar_lea.vmem [#allocation2], 16
  %v86 = vld [vmem:[%s85] sm:$0xff]
  %v87 = vld [vmem:[%s85 + $0x8] sm:$0xff]
  %s88 = scalar_lea.vmem [#allocation2], 32
  %v89 = vld [vmem:[%s88] sm:$0xff]
  %v90 = vld [vmem:[%s88 + $0x8] sm:$0xff]
  loop: start=0, step=1, limit=4
  $region34: #{waternet0313_forward.1} parent=0 // loop_pre_header
    _
  $region35: #{waternet0313_forward.1} parent=0 // loop_header
    %s92 = sphi 0, %s96
    %p93 = scmp.ge.s32.totalorder %s92, 4
    %v97 = vphi %v83, %v737
    %v98 = vphi %v84, %v738
    %v99 = vphi %v86, %v771
    %v100 = vphi %v87, %v772
    %v101 = vphi %v89, %v789
    %v102 = vphi %v90, %v790
  $region36: #{waternet0313_forward.1} parent=0 // loop_header_branch
    %95 = sbr.rel (%p93) target = $region40
  $region37: #{waternet0313_forward.1} parent=0 // loop_body
    %s103 = smul.u32 %s92, 8
    %s104 = scalar_lea.vmem %s0, %s103
    %v105 = vld [vmem:[%s104] sm:$0xff]
    %s106 = scalar_lea.vmem %s1, %s103
    %v107 = vld [vmem:[%s106] sm:$0xff]
    %s108 = scalar_lea.vmem %s2, %s103
    %v109 = vld [vmem:[%s108] sm:$0xff]
    %s110 = smul.u32 %s103, 2
    %s111 = smul.addr %s110, 4
    %s112 = scalar_lea.vmem %s3, %s111
    %v113 = vld [vmem:[%s112] sm:$0xf]
    %v114 = vld [vmem:[%s112 + $0x4] sm:$0xf]
    %v115 = vunpack.c.l.bf16 %v113
    %v116 = vunpack.c.l.bf16 %v114
    %v117 = vmul.f32 %v115, 5.0
    %v118 = vmul.f32 %v116, 5.0
    %v119 = vmul.f32 %v117, 1.442695
    %v120 = vpow.pop %v119
    %v121 = vmul.f32 %v118, 1.442695
    %v122 = vpow.pop %v121
    %v123 = vlaneseq
    %v124 = vshrl.u32 %v123, 7
    %v125 = vsub.s32 0, %v124
    %v126 = vrot.slane %v105, %v125
    %v127 = vadd.f32 %v97, %v126
    %v128 = vadd.f32 %v98, %v126
    %v129 = vmin.f32 %v127, %v120
    %v130 = vmin.f32 %v128, %v122
    %v131 = vsub.f32 %v127, %v129
    %v132 = vsub.f32 %v128, %v130
    %v133 = vmax.f32 %v131, 0.0
    %v134 = vmax.f32 %v132, 0.0
    %v135 = vlaneseq
    %v136 = vshrl.u32 %v135, 7
    %v137 = vsub.s32 0, %v136
    %v138 = vrot.slane %v107, %v137
    %v139 = vmul.f32 %v138, %v79
    %v140 = vmul.f32 %v138, %v80
    %v141 = vadd.f32 %v99, %v139
    %v142 = vadd.f32 %v100, %v140
    %v143 = vadd.f32 %v141, %v129
    %v144 = vadd.f32 %v142, %v130
    %v145 = vlaneseq
    %v146 = vshrl.u32 %v145, 7
    %v147 = vsub.s32 0, %v146
    %v148 = vrot.slane %v109, %v147
    %v149 = vmul.f32 %v148, %v77
    %v150 = vmul.f32 %v148, %v78
    %v151 = vsub.f32 %v143, %v149
    %v152 = vsub.f32 %v144, %v150
    %v153 = vmax.f32 %v151, 0.0
    %v154 = vmax.f32 %v152, 0.0
    %v155 = vsub.f32 %v153, %v68
    %v156 = vsub.f32 %v154, %v69
    %v157 = vmul.f32 %v56, %v155
    %v158 = vmul.f32 %v57, %v156
    %v159 = vmax.f32 %v157, 0.0
    %v160 = vmax.f32 %v158, 0.0
    %v161 = vmin.f32 %v153, %v68
    %v162 = vmin.f32 %v154, %v69
    %v163 = vmul.f32 %v59, %v161
    %v164 = vmul.f32 %v60, %v162
    %v165 = vsub.f32 %v153, %v159
    %v166 = vsub.f32 %v154, %v160
    %v167 = vsub.f32 %v165, %v163
    %v168 = vsub.f32 %v166, %v164
    %v169 = vmul.f32 %v163, %v81
    %v170 = vmul.f32 %v164, %v82
    %v171 = vmul.f32 %v138, %v74
    %v172 = vmul.f32 %v138, %v75
    %v173 = vadd.f32 %v101, %v171
    %v174 = vadd.f32 %v102, %v172
    %v175 = vmul.f32 %v163, %v65
    %v176 = vmul.f32 %v164, %v66
    %v177 = vadd.f32 %v173, %v175
    %v178 = vadd.f32 %v174, %v176
    %v179 = vmul.f32 %v62, %v177
    %v180 = vmul.f32 %v63, %v178
    %v181 = vadd.f32 %v179, %v71
    %v182 = vadd.f32 %v180, %v72
    %v183 = vsub.f32 %v177, %v181
    %v184 = vsub.f32 %v178, %v182
    %v185 = vmax.f32 %v183, 0.0
    %v186 = vmax.f32 %v184, 0.0
    %v187 = vadd.f32 %v159, %v169
    %v188 = vadd.f32 %v160, %v170
    %v189 = vadd.f32 %v187, %v181
    %v190 = vadd.f32 %v188, %v182
    %s191 = sadd.s32 %s103, 3
    %s192 = smul.u32 %s191, 16
    %s193 = scalar_lea.vmem [#allocation3], %s192
    %194 = vst [vmem:[%s193] sm:$0xff] %v189
    %195 = vst [vmem:[%s193 + $0x8] sm:$0xff] %v190
    %s196 = sadd.s32 %s103, 1
    %s197 = smul.u32 %s196, 2
    %s198 = smul.addr %s197, 4
    %s199 = scalar_lea.vmem %s3, %s198
    %v200 = vld [vmem:[%s199] sm:$0xf]
    %v201 = vld [vmem:[%s199 + $0x4] sm:$0xf]
    %v202 = vunpack.c.l.bf16 %v200
    %v203 = vunpack.c.l.bf16 %v201
    %v204 = vmul.f32 %v202, 5.0
    %v205 = vmul.f32 %v203, 5.0
    %v206 = vmul.f32 %v204, 1.442695
    %v207 = vpow.pop %v206
    %v208 = vmul.f32 %v205, 1.442695
    %v209 = vpow.pop %v208
    %v210 = vlaneseq
    %v211 = vshrl.u32 %v210, 7
    %v212 = vsub.s32 1, %v211
    %v213 = vrot.slane %v105, %v212
    %v214 = vadd.f32 %v133, %v213
    %v215 = vadd.f32 %v134, %v213
    %v216 = vmin.f32 %v214, %v207
    %v217 = vmin.f32 %v215, %v209
    %v218 = vsub.f32 %v214, %v216
    %v219 = vsub.f32 %v215, %v217
    %v220 = vmax.f32 %v218, 0.0
    %v221 = vmax.f32 %v219, 0.0
    %v222 = vlaneseq
    %v223 = vshrl.u32 %v222, 7
    %v224 = vsub.s32 1, %v223
    %v225 = vrot.slane %v107, %v224
    %v226 = vmul.f32 %v225, %v79
    %v227 = vmul.f32 %v225, %v80
    %v228 = vadd.f32 %v167, %v226
    %v229 = vadd.f32 %v168, %v227
    %v230 = vadd.f32 %v228, %v216
    %v231 = vadd.f32 %v229, %v217
    %v232 = vlaneseq
    %v233 = vshrl.u32 %v232, 7
    %v234 = vsub.s32 1, %v233
    %v235 = vrot.slane %v109, %v234
    %v236 = vmul.f32 %v235, %v77
    %v237 = vmul.f32 %v235, %v78
    %v238 = vsub.f32 %v230, %v236
    %v239 = vsub.f32 %v231, %v237
    %v240 = vmax.f32 %v238, 0.0
    %v241 = vmax.f32 %v239, 0.0
    %v242 = vsub.f32 %v240, %v68
    %v243 = vsub.f32 %v241, %v69
    %v244 = vmul.f32 %v56, %v242
    %v245 = vmul.f32 %v57, %v243
    %v246 = vmax.f32 %v244, 0.0
    %v247 = vmax.f32 %v245, 0.0
    %v248 = vmin.f32 %v240, %v68
    %v249 = vmin.f32 %v241, %v69
    %v250 = vmul.f32 %v59, %v248
    %v251 = vmul.f32 %v60, %v249
    %v252 = vsub.f32 %v240, %v246
    %v253 = vsub.f32 %v241, %v247
    %v254 = vsub.f32 %v252, %v250
    %v255 = vsub.f32 %v253, %v251
    %v256 = vmul.f32 %v250, %v81
    %v257 = vmul.f32 %v251, %v82
    %v258 = vmul.f32 %v225, %v74
    %v259 = vmul.f32 %v225, %v75
    %v260 = vadd.f32 %v185, %v258
    %v261 = vadd.f32 %v186, %v259
    %v262 = vmul.f32 %v250, %v65
    %v263 = vmul.f32 %v251, %v66
    %v264 = vadd.f32 %v260, %v262
    %v265 = vadd.f32 %v261, %v263
    %v266 = vmul.f32 %v62, %v264
    %v267 = vmul.f32 %v63, %v265
    %v268 = vadd.f32 %v266, %v71
    %v269 = vadd.f32 %v267, %v72
    %v270 = vsub.f32 %v264, %v268
    %v271 = vsub.f32 %v265, %v269
    %v272 = vmax.f32 %v270, 0.0
    %v273 = vmax.f32 %v271, 0.0
    %v274 = vadd.f32 %v246, %v256
    %v275 = vadd.f32 %v247, %v257
    %v276 = vadd.f32 %v274, %v268
    %v277 = vadd.f32 %v275, %v269
    %s278 = sadd.s32 %s103, 4
    %s279 = smul.u32 %s278, 16
    %s280 = scalar_lea.vmem [#allocation3], %s279
    %281 = vst [vmem:[%s280] sm:$0xff] %v276
    %282 = vst [vmem:[%s280 + $0x8] sm:$0xff] %v277
    %s283 = sadd.s32 %s103, 2
    %s284 = smul.u32 %s283, 2
    %s285 = smul.addr %s284, 4
    %s286 = scalar_lea.vmem %s3, %s285
    %v287 = vld [vmem:[%s286] sm:$0xf]
    %v288 = vld [vmem:[%s286 + $0x4] sm:$0xf]
    %v289 = vunpack.c.l.bf16 %v287
    %v290 = vunpack.c.l.bf16 %v288
    %v291 = vmul.f32 %v289, 5.0
    %v292 = vmul.f32 %v290, 5.0
    %v293 = vmul.f32 %v291, 1.442695
    %v294 = vpow.pop %v293
    %v295 = vmul.f32 %v292, 1.442695
    %v296 = vpow.pop %v295
    %v297 = vlaneseq
    %v298 = vshrl.u32 %v297, 7
    %v299 = vsub.s32 2, %v298
    %v300 = vrot.slane %v105, %v299
    %v301 = vadd.f32 %v220, %v300
    %v302 = vadd.f32 %v221, %v300
    %v303 = vmin.f32 %v301, %v294
    %v304 = vmin.f32 %v302, %v296
    %v305 = vsub.f32 %v301, %v303
    %v306 = vsub.f32 %v302, %v304
    %v307 = vmax.f32 %v305, 0.0
    %v308 = vmax.f32 %v306, 0.0
    %v309 = vlaneseq
    %v310 = vshrl.u32 %v309, 7
    %v311 = vsub.s32 2, %v310
    %v312 = vrot.slane %v107, %v311
    %v313 = vmul.f32 %v312, %v79
    %v314 = vmul.f32 %v312, %v80
    %v315 = vadd.f32 %v254, %v313
    %v316 = vadd.f32 %v255, %v314
    %v317 = vadd.f32 %v315, %v303
    %v318 = vadd.f32 %v316, %v304
    %v319 = vlaneseq
    %v320 = vshrl.u32 %v319, 7
    %v321 = vsub.s32 2, %v320
    %v322 = vrot.slane %v109, %v321
    %v323 = vmul.f32 %v322, %v77
    %v324 = vmul.f32 %v322, %v78
    %v325 = vsub.f32 %v317, %v323
    %v326 = vsub.f32 %v318, %v324
    %v327 = vmax.f32 %v325, 0.0
    %v328 = vmax.f32 %v326, 0.0
    %v329 = vsub.f32 %v327, %v68
    %v330 = vsub.f32 %v328, %v69
    %v331 = vmul.f32 %v56, %v329
    %v332 = vmul.f32 %v57, %v330
    %v333 = vmax.f32 %v331, 0.0
    %v334 = vmax.f32 %v332, 0.0
    %v335 = vmin.f32 %v327, %v68
    %v336 = vmin.f32 %v328, %v69
    %v337 = vmul.f32 %v59, %v335
    %v338 = vmul.f32 %v60, %v336
    %v339 = vsub.f32 %v327, %v333
    %v340 = vsub.f32 %v328, %v334
    %v341 = vsub.f32 %v339, %v337
    %v342 = vsub.f32 %v340, %v338
    %v343 = vmul.f32 %v337, %v81
    %v344 = vmul.f32 %v338, %v82
    %v345 = vmul.f32 %v312, %v74
    %v346 = vmul.f32 %v312, %v75
    %v347 = vadd.f32 %v272, %v345
    %v348 = vadd.f32 %v273, %v346
    %v349 = vmul.f32 %v337, %v65
    %v350 = vmul.f32 %v338, %v66
    %v351 = vadd.f32 %v347, %v349
    %v352 = vadd.f32 %v348, %v350
    %v353 = vmul.f32 %v62, %v351
    %v354 = vmul.f32 %v63, %v352
    %v355 = vadd.f32 %v353, %v71
    %v356 = vadd.f32 %v354, %v72
    %v357 = vsub.f32 %v351, %v355
    %v358 = vsub.f32 %v352, %v356
    %v359 = vmax.f32 %v357, 0.0
    %v360 = vmax.f32 %v358, 0.0
    %v361 = vadd.f32 %v333, %v343
    %v362 = vadd.f32 %v334, %v344
    %v363 = vadd.f32 %v361, %v355
    %v364 = vadd.f32 %v362, %v356
    %s365 = sadd.s32 %s103, 5
    %s366 = smul.u32 %s365, 16
    %s367 = scalar_lea.vmem [#allocation3], %s366
    %368 = vst [vmem:[%s367] sm:$0xff] %v363
    %369 = vst [vmem:[%s367 + $0x8] sm:$0xff] %v364
    %s370 = smul.u32 %s191, 2
    %s371 = smul.addr %s370, 4
    %s372 = scalar_lea.vmem %s3, %s371
    %v373 = vld [vmem:[%s372] sm:$0xf]
    %v374 = vld [vmem:[%s372 + $0x4] sm:$0xf]
    %v375 = vunpack.c.l.bf16 %v373
    %v376 = vunpack.c.l.bf16 %v374
    %v377 = vmul.f32 %v375, 5.0
    %v378 = vmul.f32 %v376, 5.0
    %v379 = vmul.f32 %v377, 1.442695
    %v380 = vpow.pop %v379
    %v381 = vmul.f32 %v378, 1.442695
    %v382 = vpow.pop %v381
    %v383 = vlaneseq
    %v384 = vshrl.u32 %v383, 7
    %v385 = vsub.s32 3, %v384
    %v386 = vrot.slane %v105, %v385
    %v387 = vadd.f32 %v307, %v386
    %v388 = vadd.f32 %v308, %v386
    %v389 = vmin.f32 %v387, %v380
    %v390 = vmin.f32 %v388, %v382
    %v391 = vsub.f32 %v387, %v389
    %v392 = vsub.f32 %v388, %v390
    %v393 = vmax.f32 %v391, 0.0
    %v394 = vmax.f32 %v392, 0.0
    %v395 = vlaneseq
    %v396 = vshrl.u32 %v395, 7
    %v397 = vsub.s32 3, %v396
    %v398 = vrot.slane %v107, %v397
    %v399 = vmul.f32 %v398, %v79
    %v400 = vmul.f32 %v398, %v80
    %v401 = vadd.f32 %v341, %v399
    %v402 = vadd.f32 %v342, %v400
    %v403 = vadd.f32 %v401, %v389
    %v404 = vadd.f32 %v402, %v390
    %v405 = vlaneseq
    %v406 = vshrl.u32 %v405, 7
    %v407 = vsub.s32 3, %v406
    %v408 = vrot.slane %v109, %v407
    %v409 = vmul.f32 %v408, %v77
    %v410 = vmul.f32 %v408, %v78
    %v411 = vsub.f32 %v403, %v409
    %v412 = vsub.f32 %v404, %v410
    %v413 = vmax.f32 %v411, 0.0
    %v414 = vmax.f32 %v412, 0.0
    %v415 = vsub.f32 %v413, %v68
    %v416 = vsub.f32 %v414, %v69
    %v417 = vmul.f32 %v56, %v415
    %v418 = vmul.f32 %v57, %v416
    %v419 = vmax.f32 %v417, 0.0
    %v420 = vmax.f32 %v418, 0.0
    %v421 = vmin.f32 %v413, %v68
    %v422 = vmin.f32 %v414, %v69
    %v423 = vmul.f32 %v59, %v421
    %v424 = vmul.f32 %v60, %v422
    %v425 = vsub.f32 %v413, %v419
    %v426 = vsub.f32 %v414, %v420
    %v427 = vsub.f32 %v425, %v423
    %v428 = vsub.f32 %v426, %v424
    %v429 = vmul.f32 %v423, %v81
    %v430 = vmul.f32 %v424, %v82
    %v431 = vmul.f32 %v398, %v74
    %v432 = vmul.f32 %v398, %v75
    %v433 = vadd.f32 %v359, %v431
    %v434 = vadd.f32 %v360, %v432
    %v435 = vmul.f32 %v423, %v65
    %v436 = vmul.f32 %v424, %v66
    %v437 = vadd.f32 %v433, %v435
    %v438 = vadd.f32 %v434, %v436
    %v439 = vmul.f32 %v62, %v437
    %v440 = vmul.f32 %v63, %v438
    %v441 = vadd.f32 %v439, %v71
    %v442 = vadd.f32 %v440, %v72
    %v443 = vsub.f32 %v437, %v441
    %v444 = vsub.f32 %v438, %v442
    %v445 = vmax.f32 %v443, 0.0
    %v446 = vmax.f32 %v444, 0.0
    %v447 = vadd.f32 %v419, %v429
    %v448 = vadd.f32 %v420, %v430
    %v449 = vadd.f32 %v447, %v441
    %v450 = vadd.f32 %v448, %v442
    %s451 = sadd.s32 %s103, 6
    %s452 = smul.u32 %s451, 16
    %s453 = scalar_lea.vmem [#allocation3], %s452
    %454 = vst [vmem:[%s453] sm:$0xff] %v449
    %455 = vst [vmem:[%s453 + $0x8] sm:$0xff] %v450
    %s456 = smul.u32 %s278, 2
    %s457 = smul.addr %s456, 4
    %s458 = scalar_lea.vmem %s3, %s457
    %v459 = vld [vmem:[%s458] sm:$0xf]
    %v460 = vld [vmem:[%s458 + $0x4] sm:$0xf]
    %v461 = vunpack.c.l.bf16 %v459
    %v462 = vunpack.c.l.bf16 %v460
    %v463 = vmul.f32 %v461, 5.0
    %v464 = vmul.f32 %v462, 5.0
    %v465 = vmul.f32 %v463, 1.442695
    %v466 = vpow.pop %v465
    %v467 = vmul.f32 %v464, 1.442695
    %v468 = vpow.pop %v467
    %v469 = vlaneseq
    %v470 = vshrl.u32 %v469, 7
    %v471 = vsub.s32 4, %v470
    %v472 = vrot.slane %v105, %v471
    %v473 = vadd.f32 %v393, %v472
    %v474 = vadd.f32 %v394, %v472
    %v475 = vmin.f32 %v473, %v466
    %v476 = vmin.f32 %v474, %v468
    %v477 = vsub.f32 %v473, %v475
    %v478 = vsub.f32 %v474, %v476
    %v479 = vmax.f32 %v477, 0.0
    %v480 = vmax.f32 %v478, 0.0
    %v481 = vlaneseq
    %v482 = vshrl.u32 %v481, 7
    %v483 = vsub.s32 4, %v482
    %v484 = vrot.slane %v107, %v483
    %v485 = vmul.f32 %v484, %v79
    %v486 = vmul.f32 %v484, %v80
    %v487 = vadd.f32 %v427, %v485
    %v488 = vadd.f32 %v428, %v486
    %v489 = vadd.f32 %v487, %v475
    %v490 = vadd.f32 %v488, %v476
    %v491 = vlaneseq
    %v492 = vshrl.u32 %v491, 7
    %v493 = vsub.s32 4, %v492
    %v494 = vrot.slane %v109, %v493
    %v495 = vmul.f32 %v494, %v77
    %v496 = vmul.f32 %v494, %v78
    %v497 = vsub.f32 %v489, %v495
    %v498 = vsub.f32 %v490, %v496
    %v499 = vmax.f32 %v497, 0.0
    %v500 = vmax.f32 %v498, 0.0
    %v501 = vsub.f32 %v499, %v68
    %v502 = vsub.f32 %v500, %v69
    %v503 = vmul.f32 %v56, %v501
    %v504 = vmul.f32 %v57, %v502
    %v505 = vmax.f32 %v503, 0.0
    %v506 = vmax.f32 %v504, 0.0
    %v507 = vmin.f32 %v499, %v68
    %v508 = vmin.f32 %v500, %v69
    %v509 = vmul.f32 %v59, %v507
    %v510 = vmul.f32 %v60, %v508
    %v511 = vsub.f32 %v499, %v505
    %v512 = vsub.f32 %v500, %v506
    %v513 = vsub.f32 %v511, %v509
    %v514 = vsub.f32 %v512, %v510
    %v515 = vmul.f32 %v509, %v81
    %v516 = vmul.f32 %v510, %v82
    %v517 = vmul.f32 %v484, %v74
    %v518 = vmul.f32 %v484, %v75
    %v519 = vadd.f32 %v445, %v517
    %v520 = vadd.f32 %v446, %v518
    %v521 = vmul.f32 %v509, %v65
    %v522 = vmul.f32 %v510, %v66
    %v523 = vadd.f32 %v519, %v521
    %v524 = vadd.f32 %v520, %v522
    %v525 = vmul.f32 %v62, %v523
    %v526 = vmul.f32 %v63, %v524
    %v527 = vadd.f32 %v525, %v71
    %v528 = vadd.f32 %v526, %v72
    %v529 = vsub.f32 %v523, %v527
    %v530 = vsub.f32 %v524, %v528
    %v531 = vmax.f32 %v529, 0.0
    %v532 = vmax.f32 %v530, 0.0
    %v533 = vadd.f32 %v505, %v515
    %v534 = vadd.f32 %v506, %v516
    %v535 = vadd.f32 %v533, %v527
    %v536 = vadd.f32 %v534, %v528
    %s537 = sadd.s32 %s103, 7
    %s538 = smul.u32 %s537, 16
    %s539 = scalar_lea.vmem [#allocation3], %s538
    %540 = vst [vmem:[%s539] sm:$0xff] %v535
    %541 = vst [vmem:[%s539 + $0x8] sm:$0xff] %v536
    %s542 = smul.u32 %s365, 2
    %s543 = smul.addr %s542, 4
    %s544 = scalar_lea.vmem %s3, %s543
    %v545 = vld [vmem:[%s544] sm:$0xf]
    %v546 = vld [vmem:[%s544 + $0x4] sm:$0xf]
    %v547 = vunpack.c.l.bf16 %v545
    %v548 = vunpack.c.l.bf16 %v546
    %v549 = vmul.f32 %v547, 5.0
    %v550 = vmul.f32 %v548, 5.0
    %v551 = vmul.f32 %v549, 1.442695
    %v552 = vpow.pop %v551
    %v553 = vmul.f32 %v550, 1.442695
    %v554 = vpow.pop %v553
    %v555 = vlaneseq
    %v556 = vshrl.u32 %v555, 7
    %v557 = vsub.s32 5, %v556
    %v558 = vrot.slane %v105, %v557
    %v559 = vadd.f32 %v479, %v558
    %v560 = vadd.f32 %v480, %v558
    %v561 = vmin.f32 %v559, %v552
    %v562 = vmin.f32 %v560, %v554
    %v563 = vsub.f32 %v559, %v561
    %v564 = vsub.f32 %v560, %v562
    %v565 = vmax.f32 %v563, 0.0
    %v566 = vmax.f32 %v564, 0.0
    %v567 = vlaneseq
    %v568 = vshrl.u32 %v567, 7
    %v569 = vsub.s32 5, %v568
    %v570 = vrot.slane %v107, %v569
    %v571 = vmul.f32 %v570, %v79
    %v572 = vmul.f32 %v570, %v80
    %v573 = vadd.f32 %v513, %v571
    %v574 = vadd.f32 %v514, %v572
    %v575 = vadd.f32 %v573, %v561
    %v576 = vadd.f32 %v574, %v562
    %v577 = vlaneseq
    %v578 = vshrl.u32 %v577, 7
    %v579 = vsub.s32 5, %v578
    %v580 = vrot.slane %v109, %v579
    %v581 = vmul.f32 %v580, %v77
    %v582 = vmul.f32 %v580, %v78
    %v583 = vsub.f32 %v575, %v581
    %v584 = vsub.f32 %v576, %v582
    %v585 = vmax.f32 %v583, 0.0
    %v586 = vmax.f32 %v584, 0.0
    %v587 = vsub.f32 %v585, %v68
    %v588 = vsub.f32 %v586, %v69
    %v589 = vmul.f32 %v56, %v587
    %v590 = vmul.f32 %v57, %v588
    %v591 = vmax.f32 %v589, 0.0
    %v592 = vmax.f32 %v590, 0.0
    %v593 = vmin.f32 %v585, %v68
    %v594 = vmin.f32 %v586, %v69
    %v595 = vmul.f32 %v59, %v593
    %v596 = vmul.f32 %v60, %v594
    %v597 = vsub.f32 %v585, %v591
    %v598 = vsub.f32 %v586, %v592
    %v599 = vsub.f32 %v597, %v595
    %v600 = vsub.f32 %v598, %v596
    %v601 = vmul.f32 %v595, %v81
    %v602 = vmul.f32 %v596, %v82
    %v603 = vmul.f32 %v570, %v74
    %v604 = vmul.f32 %v570, %v75
    %v605 = vadd.f32 %v531, %v603
    %v606 = vadd.f32 %v532, %v604
    %v607 = vmul.f32 %v595, %v65
    %v608 = vmul.f32 %v596, %v66
    %v609 = vadd.f32 %v605, %v607
    %v610 = vadd.f32 %v606, %v608
    %v611 = vmul.f32 %v62, %v609
    %v612 = vmul.f32 %v63, %v610
    %v613 = vadd.f32 %v611, %v71
    %v614 = vadd.f32 %v612, %v72
    %v615 = vsub.f32 %v609, %v613
    %v616 = vsub.f32 %v610, %v614
    %v617 = vmax.f32 %v615, 0.0
    %v618 = vmax.f32 %v616, 0.0
    %v619 = vadd.f32 %v591, %v601
    %v620 = vadd.f32 %v592, %v602
    %v621 = vadd.f32 %v619, %v613
    %v622 = vadd.f32 %v620, %v614
    %s623 = sadd.s32 %s103, 8
    %s624 = smul.u32 %s623, 16
    %s625 = scalar_lea.vmem [#allocation3], %s624
    %626 = vst [vmem:[%s625] sm:$0xff] %v621
    %627 = vst [vmem:[%s625 + $0x8] sm:$0xff] %v622
    %s628 = smul.u32 %s451, 2
    %s629 = smul.addr %s628, 4
    %s630 = scalar_lea.vmem %s3, %s629
    %v631 = vld [vmem:[%s630] sm:$0xf]
    %v632 = vld [vmem:[%s630 + $0x4] sm:$0xf]
    %v633 = vunpack.c.l.bf16 %v631
    %v634 = vunpack.c.l.bf16 %v632
    %v635 = vmul.f32 %v633, 5.0
    %v636 = vmul.f32 %v634, 5.0
    %v637 = vmul.f32 %v635, 1.442695
    %v638 = vpow.pop %v637
    %v639 = vmul.f32 %v636, 1.442695
    %v640 = vpow.pop %v639
    %v641 = vlaneseq
    %v642 = vshrl.u32 %v641, 7
    %v643 = vsub.s32 6, %v642
    %v644 = vrot.slane %v105, %v643
    %v645 = vadd.f32 %v565, %v644
    %v646 = vadd.f32 %v566, %v644
    %v647 = vmin.f32 %v645, %v638
    %v648 = vmin.f32 %v646, %v640
    %v649 = vsub.f32 %v645, %v647
    %v650 = vsub.f32 %v646, %v648
    %v651 = vmax.f32 %v649, 0.0
    %v652 = vmax.f32 %v650, 0.0
    %v653 = vlaneseq
    %v654 = vshrl.u32 %v653, 7
    %v655 = vsub.s32 6, %v654
    %v656 = vrot.slane %v107, %v655
    %v657 = vmul.f32 %v656, %v79
    %v658 = vmul.f32 %v656, %v80
    %v659 = vadd.f32 %v599, %v657
    %v660 = vadd.f32 %v600, %v658
    %v661 = vadd.f32 %v659, %v647
    %v662 = vadd.f32 %v660, %v648
    %v663 = vlaneseq
    %v664 = vshrl.u32 %v663, 7
    %v665 = vsub.s32 6, %v664
    %v666 = vrot.slane %v109, %v665
    %v667 = vmul.f32 %v666, %v77
    %v668 = vmul.f32 %v666, %v78
    %v669 = vsub.f32 %v661, %v667
    %v670 = vsub.f32 %v662, %v668
    %v671 = vmax.f32 %v669, 0.0
    %v672 = vmax.f32 %v670, 0.0
    %v673 = vsub.f32 %v671, %v68
    %v674 = vsub.f32 %v672, %v69
    %v675 = vmul.f32 %v56, %v673
    %v676 = vmul.f32 %v57, %v674
    %v677 = vmax.f32 %v675, 0.0
    %v678 = vmax.f32 %v676, 0.0
    %v679 = vmin.f32 %v671, %v68
    %v680 = vmin.f32 %v672, %v69
    %v681 = vmul.f32 %v59, %v679
    %v682 = vmul.f32 %v60, %v680
    %v683 = vsub.f32 %v671, %v677
    %v684 = vsub.f32 %v672, %v678
    %v685 = vsub.f32 %v683, %v681
    %v686 = vsub.f32 %v684, %v682
    %v687 = vmul.f32 %v681, %v81
    %v688 = vmul.f32 %v682, %v82
    %v689 = vmul.f32 %v656, %v74
    %v690 = vmul.f32 %v656, %v75
    %v691 = vadd.f32 %v617, %v689
    %v692 = vadd.f32 %v618, %v690
    %v693 = vmul.f32 %v681, %v65
    %v694 = vmul.f32 %v682, %v66
    %v695 = vadd.f32 %v691, %v693
    %v696 = vadd.f32 %v692, %v694
    %v697 = vmul.f32 %v62, %v695
    %v698 = vmul.f32 %v63, %v696
    %v699 = vadd.f32 %v697, %v71
    %v700 = vadd.f32 %v698, %v72
    %v701 = vsub.f32 %v695, %v699
    %v702 = vsub.f32 %v696, %v700
    %v703 = vmax.f32 %v701, 0.0
    %v704 = vmax.f32 %v702, 0.0
    %v705 = vadd.f32 %v677, %v687
    %v706 = vadd.f32 %v678, %v688
    %v707 = vadd.f32 %v705, %v699
    %v708 = vadd.f32 %v706, %v700
    %s709 = sadd.s32 %s103, 9
    %s710 = smul.u32 %s709, 16
    %s711 = scalar_lea.vmem [#allocation3], %s710
    %712 = vst [vmem:[%s711] sm:$0xff] %v707
    %713 = vst [vmem:[%s711 + $0x8] sm:$0xff] %v708
    %s714 = smul.u32 %s537, 2
    %s715 = smul.addr %s714, 4
    %s716 = scalar_lea.vmem %s3, %s715
    %v717 = vld [vmem:[%s716] sm:$0xf]
    %v718 = vld [vmem:[%s716 + $0x4] sm:$0xf]
    %v719 = vunpack.c.l.bf16 %v717
    %v720 = vunpack.c.l.bf16 %v718
    %v721 = vmul.f32 %v719, 5.0
    %v722 = vmul.f32 %v720, 5.0
    %v723 = vmul.f32 %v721, 1.442695
    %v724 = vpow.pop %v723
    %v725 = vmul.f32 %v722, 1.442695
    %v726 = vpow.pop %v725
    %v727 = vlaneseq
    %v728 = vshrl.u32 %v727, 7
    %v729 = vsub.s32 7, %v728
    %v730 = vrot.slane %v105, %v729
    %v731 = vadd.f32 %v651, %v730
    %v732 = vadd.f32 %v652, %v730
    %v733 = vmin.f32 %v731, %v724
    %v734 = vmin.f32 %v732, %v726
    %v735 = vsub.f32 %v731, %v733
    %v736 = vsub.f32 %v732, %v734
    %v737 = vmax.f32 %v735, 0.0
    %v738 = vmax.f32 %v736, 0.0
    %v739 = vlaneseq
    %v740 = vshrl.u32 %v739, 7
    %v741 = vsub.s32 7, %v740
    %v742 = vrot.slane %v107, %v741
    %v743 = vmul.f32 %v742, %v79
    %v744 = vmul.f32 %v742, %v80
    %v745 = vadd.f32 %v685, %v743
    %v746 = vadd.f32 %v686, %v744
    %v747 = vadd.f32 %v745, %v733
    %v748 = vadd.f32 %v746, %v734
    %v749 = vlaneseq
    %v750 = vshrl.u32 %v749, 7
    %v751 = vsub.s32 7, %v750
    %v752 = vrot.slane %v109, %v751
    %v753 = vmul.f32 %v752, %v77
    %v754 = vmul.f32 %v752, %v78
    %v755 = vsub.f32 %v747, %v753
    %v756 = vsub.f32 %v748, %v754
    %v757 = vmax.f32 %v755, 0.0
    %v758 = vmax.f32 %v756, 0.0
    %v759 = vsub.f32 %v757, %v68
    %v760 = vsub.f32 %v758, %v69
    %v761 = vmul.f32 %v56, %v759
    %v762 = vmul.f32 %v57, %v760
    %v763 = vmax.f32 %v761, 0.0
    %v764 = vmax.f32 %v762, 0.0
    %v765 = vmin.f32 %v757, %v68
    %v766 = vmin.f32 %v758, %v69
    %v767 = vmul.f32 %v59, %v765
    %v768 = vmul.f32 %v60, %v766
    %v769 = vsub.f32 %v757, %v763
    %v770 = vsub.f32 %v758, %v764
    %v771 = vsub.f32 %v769, %v767
    %v772 = vsub.f32 %v770, %v768
    %v773 = vmul.f32 %v767, %v81
    %v774 = vmul.f32 %v768, %v82
    %v775 = vmul.f32 %v742, %v74
    %v776 = vmul.f32 %v742, %v75
    %v777 = vadd.f32 %v703, %v775
    %v778 = vadd.f32 %v704, %v776
    %v779 = vmul.f32 %v767, %v65
    %v780 = vmul.f32 %v768, %v66
    %v781 = vadd.f32 %v777, %v779
    %v782 = vadd.f32 %v778, %v780
    %v783 = vmul.f32 %v62, %v781
    %v784 = vmul.f32 %v63, %v782
    %v785 = vadd.f32 %v783, %v71
    %v786 = vadd.f32 %v784, %v72
    %v787 = vsub.f32 %v781, %v785
    %v788 = vsub.f32 %v782, %v786
    %v789 = vmax.f32 %v787, 0.0
    %v790 = vmax.f32 %v788, 0.0
    %v791 = vadd.f32 %v763, %v773
    %v792 = vadd.f32 %v764, %v774
    %v793 = vadd.f32 %v791, %v785
    %v794 = vadd.f32 %v792, %v786
    %s795 = sadd.s32 %s103, 10
    %s796 = smul.u32 %s795, 16
    %s797 = scalar_lea.vmem [#allocation3], %s796
    %798 = vst [vmem:[%s797] sm:$0xff] %v793
    %799 = vst [vmem:[%s797 + $0x8] sm:$0xff] %v794
  $region38: #{waternet0313_forward.1} parent=0 // loop_footer
    %s96 = sadd.s32 1, %s92
  $region39: #{waternet0313_forward.1} parent=0 // loop_footer_branch
    %91 = sbr.rel target = $region35
  $region40: #{waternet0313_forward.1} parent=0 // loop_exit
    _
  %800 = vst [vmem:[#allocation2] sm:$0xff] %v97
  %801 = vst [vmem:[#allocation2 + $0x8] sm:$0xff] %v98
  %802 = vst [vmem:[%s85] sm:$0xff] %v99
  %803 = vst [vmem:[%s85 + $0x8] sm:$0xff] %v100
  %804 = vst [vmem:[%s88] sm:$0xff] %v101
  %805 = vst [vmem:[%s88 + $0x8] sm:$0xff] %v102
  %v806 = vld [vmem:[%s5] sm:$0xff]
  %v807 = vld [vmem:[%s5 + $0x8] sm:$0xff]
  %s808 = scalar_lea.vmem %s5, 16
  %v809 = vld [vmem:[%s808] sm:$0xff]
  %v810 = vld [vmem:[%s808 + $0x8] sm:$0xff]
  %s811 = scalar_lea.vmem %s5, 32
  %v812 = vld [vmem:[%s811] sm:$0xff]
  %v813 = vld [vmem:[%s811 + $0x8] sm:$0xff]
  %s814 = scalar_lea.vmem %s5, 48
  %v815 = vld [vmem:[%s814] sm:$0xff]
  %v816 = vld [vmem:[%s814 + $0x8] sm:$0xff]
  %v817 = vld [vmem:[#allocation3] sm:$0xff]
  %v818 = vld [vmem:[#allocation3 + $0x8] sm:$0xff]
  %v819 = vld [vmem:[#allocation3 + $0x10] sm:$0xff]
  %v820 = vld [vmem:[#allocation3 + $0x18] sm:$0xff]
  %v821 = vld [vmem:[#allocation3 + $0x20] sm:$0xff]
  %v822 = vld [vmem:[#allocation3 + $0x28] sm:$0xff]
  %v823 = vld [vmem:[#allocation3 + $0x30] sm:$0xff]
  %v824 = vld [vmem:[#allocation3 + $0x38] sm:$0xff]
  %v825 = vld [vmem:[#allocation3 + $0x40] sm:$0xff]
  %v826 = vld [vmem:[#allocation3 + $0x48] sm:$0xff]
  %v827 = vld [vmem:[#allocation3 + $0x50] sm:$0xff]
  %v828 = vld [vmem:[#allocation3 + $0x58] sm:$0xff]
  %v829 = vld [vmem:[#allocation3 + $0x60] sm:$0xff]
  %v830 = vld [vmem:[#allocation3 + $0x68] sm:$0xff]
  %v831 = vld [vmem:[#allocation3 + $0x70] sm:$0xff]
  %v832 = vld [vmem:[#allocation3 + $0x78] sm:$0xff]
  %v833 = vmul.f32 %v806, %v817
  %v834 = vmul.f32 %v807, %v818
  %v835 = vmul.f32 %v806, %v819
  %v836 = vmul.f32 %v807, %v820
  %v837 = vmul.f32 %v806, %v821
  %v838 = vmul.f32 %v807, %v822
  %v839 = vmul.f32 %v806, %v823
  %v840 = vmul.f32 %v807, %v824
  %v841 = vmul.f32 %v806, %v825
  %v842 = vmul.f32 %v807, %v826
  %v843 = vmul.f32 %v806, %v827
  %v844 = vmul.f32 %v807, %v828
  %v845 = vmul.f32 %v806, %v829
  %v846 = vmul.f32 %v807, %v830
  %v847 = vmul.f32 %v806, %v831
  %v848 = vmul.f32 %v807, %v832
  %s849 = scalar_lea.vmem [#allocation3], 16
  %v850 = vld [vmem:[%s849] sm:$0xff]
  %v851 = vld [vmem:[%s849 + $0x8] sm:$0xff]
  %v852 = vld [vmem:[%s849 + $0x10] sm:$0xff]
  %v853 = vld [vmem:[%s849 + $0x18] sm:$0xff]
  %v854 = vld [vmem:[%s849 + $0x20] sm:$0xff]
  %v855 = vld [vmem:[%s849 + $0x28] sm:$0xff]
  %v856 = vld [vmem:[%s849 + $0x30] sm:$0xff]
  %v857 = vld [vmem:[%s849 + $0x38] sm:$0xff]
  %v858 = vld [vmem:[%s849 + $0x40] sm:$0xff]
  %v859 = vld [vmem:[%s849 + $0x48] sm:$0xff]
  %v860 = vld [vmem:[%s849 + $0x50] sm:$0xff]
  %v861 = vld [vmem:[%s849 + $0x58] sm:$0xff]
  %v862 = vld [vmem:[%s849 + $0x60] sm:$0xff]
  %v863 = vld [vmem:[%s849 + $0x68] sm:$0xff]
  %v864 = vld [vmem:[%s849 + $0x70] sm:$0xff]
  %v865 = vld [vmem:[%s849 + $0x78] sm:$0xff]
  %v866 = vmul.f32 %v809, %v850
  %v867 = vmul.f32 %v810, %v851
  %v868 = vmul.f32 %v809, %v852
  %v869 = vmul.f32 %v810, %v853
  %v870 = vmul.f32 %v809, %v854
  %v871 = vmul.f32 %v810, %v855
  %v872 = vmul.f32 %v809, %v856
  %v873 = vmul.f32 %v810, %v857
  %v874 = vmul.f32 %v809, %v858
  %v875 = vmul.f32 %v810, %v859
  %v876 = vmul.f32 %v809, %v860
  %v877 = vmul.f32 %v810, %v861
  %v878 = vmul.f32 %v809, %v862
  %v879 = vmul.f32 %v810, %v863
  %v880 = vmul.f32 %v809, %v864
  %v881 = vmul.f32 %v810, %v865
  %v882 = vadd.f32 %v833, %v866
  %v883 = vadd.f32 %v834, %v867
  %v884 = vadd.f32 %v835, %v868
  %v885 = vadd.f32 %v836, %v869
  %v886 = vadd.f32 %v837, %v870
  %v887 = vadd.f32 %v838, %v871
  %v888 = vadd.f32 %v839, %v872
  %v889 = vadd.f32 %v840, %v873
  %v890 = vadd.f32 %v841, %v874
  %v891 = vadd.f32 %v842, %v875
  %v892 = vadd.f32 %v843, %v876
  %v893 = vadd.f32 %v844, %v877
  %v894 = vadd.f32 %v845, %v878
  %v895 = vadd.f32 %v846, %v879
  %v896 = vadd.f32 %v847, %v880
  %v897 = vadd.f32 %v848, %v881
  %s898 = scalar_lea.vmem [#allocation3], 32
  %v899 = vld [vmem:[%s898] sm:$0xff]
  %v900 = vld [vmem:[%s898 + $0x8] sm:$0xff]
  %v901 = vld [vmem:[%s898 + $0x10] sm:$0xff]
  %v902 = vld [vmem:[%s898 + $0x18] sm:$0xff]
  %v903 = vld [vmem:[%s898 + $0x20] sm:$0xff]
  %v904 = vld [vmem:[%s898 + $0x28] sm:$0xff]
  %v905 = vld [vmem:[%s898 + $0x30] sm:$0xff]
  %v906 = vld [vmem:[%s898 + $0x38] sm:$0xff]
  %v907 = vld [vmem:[%s898 + $0x40] sm:$0xff]
  %v908 = vld [vmem:[%s898 + $0x48] sm:$0xff]
  %v909 = vld [vmem:[%s898 + $0x50] sm:$0xff]
  %v910 = vld [vmem:[%s898 + $0x58] sm:$0xff]
  %v911 = vld [vmem:[%s898 + $0x60] sm:$0xff]
  %v912 = vld [vmem:[%s898 + $0x68] sm:$0xff]
  %v913 = vld [vmem:[%s898 + $0x70] sm:$0xff]
  %v914 = vld [vmem:[%s898 + $0x78] sm:$0xff]
  %v915 = vmul.f32 %v812, %v899
  %v916 = vmul.f32 %v813, %v900
  %v917 = vmul.f32 %v812, %v901
  %v918 = vmul.f32 %v813, %v902
  %v919 = vmul.f32 %v812, %v903
  %v920 = vmul.f32 %v813, %v904
  %v921 = vmul.f32 %v812, %v905
  %v922 = vmul.f32 %v813, %v906
  %v923 = vmul.f32 %v812, %v907
  %v924 = vmul.f32 %v813, %v908
  %v925 = vmul.f32 %v812, %v909
  %v926 = vmul.f32 %v813, %v910
  %v927 = vmul.f32 %v812, %v911
  %v928 = vmul.f32 %v813, %v912
  %v929 = vmul.f32 %v812, %v913
  %v930 = vmul.f32 %v813, %v914
  %v931 = vadd.f32 %v882, %v915
  %v932 = vadd.f32 %v883, %v916
  %v933 = vadd.f32 %v884, %v917
  %v934 = vadd.f32 %v885, %v918
  %v935 = vadd.f32 %v886, %v919
  %v936 = vadd.f32 %v887, %v920
  %v937 = vadd.f32 %v888, %v921
  %v938 = vadd.f32 %v889, %v922
  %v939 = vadd.f32 %v890, %v923
  %v940 = vadd.f32 %v891, %v924
  %v941 = vadd.f32 %v892, %v925
  %v942 = vadd.f32 %v893, %v926
  %v943 = vadd.f32 %v894, %v927
  %v944 = vadd.f32 %v895, %v928
  %v945 = vadd.f32 %v896, %v929
  %v946 = vadd.f32 %v897, %v930
  %s947 = scalar_lea.vmem [#allocation3], 48
  %v948 = vld [vmem:[%s947] sm:$0xff]
  %v949 = vld [vmem:[%s947 + $0x8] sm:$0xff]
  %v950 = vld [vmem:[%s947 + $0x10] sm:$0xff]
  %v951 = vld [vmem:[%s947 + $0x18] sm:$0xff]
  %v952 = vld [vmem:[%s947 + $0x20] sm:$0xff]
  %v953 = vld [vmem:[%s947 + $0x28] sm:$0xff]
  %v954 = vld [vmem:[%s947 + $0x30] sm:$0xff]
  %v955 = vld [vmem:[%s947 + $0x38] sm:$0xff]
  %v956 = vld [vmem:[%s947 + $0x40] sm:$0xff]
  %v957 = vld [vmem:[%s947 + $0x48] sm:$0xff]
  %v958 = vld [vmem:[%s947 + $0x50] sm:$0xff]
  %v959 = vld [vmem:[%s947 + $0x58] sm:$0xff]
  %v960 = vld [vmem:[%s947 + $0x60] sm:$0xff]
  %v961 = vld [vmem:[%s947 + $0x68] sm:$0xff]
  %v962 = vld [vmem:[%s947 + $0x70] sm:$0xff]
  %v963 = vld [vmem:[%s947 + $0x78] sm:$0xff]
  %v964 = vmul.f32 %v815, %v948
  %v965 = vmul.f32 %v816, %v949
  %v966 = vmul.f32 %v815, %v950
  %v967 = vmul.f32 %v816, %v951
  %v968 = vmul.f32 %v815, %v952
  %v969 = vmul.f32 %v816, %v953
  %v970 = vmul.f32 %v815, %v954
  %v971 = vmul.f32 %v816, %v955
  %v972 = vmul.f32 %v815, %v956
  %v973 = vmul.f32 %v816, %v957
  %v974 = vmul.f32 %v815, %v958
  %v975 = vmul.f32 %v816, %v959
  %v976 = vmul.f32 %v815, %v960
  %v977 = vmul.f32 %v816, %v961
  %v978 = vmul.f32 %v815, %v962
  %v979 = vmul.f32 %v816, %v963
  %v980 = vadd.f32 %v931, %v964
  %v981 = vadd.f32 %v932, %v965
  %v982 = vadd.f32 %v933, %v966
  %v983 = vadd.f32 %v934, %v967
  %v984 = vadd.f32 %v935, %v968
  %v985 = vadd.f32 %v936, %v969
  %v986 = vadd.f32 %v937, %v970
  %v987 = vadd.f32 %v938, %v971
  %v988 = vadd.f32 %v939, %v972
  %v989 = vadd.f32 %v940, %v973
  %v990 = vadd.f32 %v941, %v974
  %v991 = vadd.f32 %v942, %v975
  %v992 = vadd.f32 %v943, %v976
  %v993 = vadd.f32 %v944, %v977
  %v994 = vadd.f32 %v945, %v978
  %v995 = vadd.f32 %v946, %v979
  %v996 = vadd.f32 %v980, %v981
  %v997 = vrot.slane %v996, 4
  %v998 = vadd.f32 %v996, %v997
  %v999 = vrot.slane %v998, 2
  %v1000 = vadd.f32 %v998, %v999
  %v1001 = vrot.slane %v1000, 1
  %v1002 = vadd.f32 %v1000, %v1001
  %v1003 = vadd.f32 %v982, %v983
  %v1004 = vrot.slane %v1003, 4
  %v1005 = vadd.f32 %v1003, %v1004
  %v1006 = vrot.slane %v1005, 2
  %v1007 = vadd.f32 %v1005, %v1006
  %v1008 = vrot.slane %v1007, 1
  %v1009 = vadd.f32 %v1007, %v1008
  %v1010 = vadd.f32 %v984, %v985
  %v1011 = vrot.slane %v1010, 4
  %v1012 = vadd.f32 %v1010, %v1011
  %v1013 = vrot.slane %v1012, 2
  %v1014 = vadd.f32 %v1012, %v1013
  %v1015 = vrot.slane %v1014, 1
  %v1016 = vadd.f32 %v1014, %v1015
  %v1017 = vadd.f32 %v986, %v987
  %v1018 = vrot.slane %v1017, 4
  %v1019 = vadd.f32 %v1017, %v1018
  %v1020 = vrot.slane %v1019, 2
  %v1021 = vadd.f32 %v1019, %v1020
  %v1022 = vrot.slane %v1021, 1
  %v1023 = vadd.f32 %v1021, %v1022
  %v1024 = vadd.f32 %v988, %v989
  %v1025 = vrot.slane %v1024, 4
  %v1026 = vadd.f32 %v1024, %v1025
  %v1027 = vrot.slane %v1026, 2
  %v1028 = vadd.f32 %v1026, %v1027
  %v1029 = vrot.slane %v1028, 1
  %v1030 = vadd.f32 %v1028, %v1029
  %v1031 = vadd.f32 %v990, %v991
  %v1032 = vrot.slane %v1031, 4
  %v1033 = vadd.f32 %v1031, %v1032
  %v1034 = vrot.slane %v1033, 2
  %v1035 = vadd.f32 %v1033, %v1034
  %v1036 = vrot.slane %v1035, 1
  %v1037 = vadd.f32 %v1035, %v1036
  %v1038 = vadd.f32 %v992, %v993
  %v1039 = vrot.slane %v1038, 4
  %v1040 = vadd.f32 %v1038, %v1039
  %v1041 = vrot.slane %v1040, 2
  %v1042 = vadd.f32 %v1040, %v1041
  %v1043 = vrot.slane %v1042, 1
  %v1044 = vadd.f32 %v1042, %v1043
  %v1045 = vadd.f32 %v994, %v995
  %v1046 = vrot.slane %v1045, 4
  %v1047 = vadd.f32 %v1045, %v1046
  %v1048 = vrot.slane %v1047, 2
  %v1049 = vadd.f32 %v1047, %v1048
  %v1050 = vrot.slane %v1049, 1
  %v1051 = vadd.f32 %v1049, %v1050
  %vm1060 = vcmask 1041409
  %v1061 = vsel %vm1060, %v1009, %v1002
  %vm1062 = vcmask 1042434
  %v1063 = vsel %vm1062, %v1016, %v1061
  %vm1064 = vcmask 1043459
  %v1065 = vsel %vm1064, %v1023, %v1063
  %vm1066 = vcmask 1044484
  %v1067 = vsel %vm1066, %v1030, %v1065
  %vm1068 = vcmask 1045509
  %v1069 = vsel %vm1068, %v1037, %v1067
  %vm1070 = vcmask 1046534
  %v1071 = vsel %vm1070, %v1044, %v1069
  %vm1072 = vcmask 1047559
  %v1073 = vsel %vm1072, %v1051, %v1071
  %1075 = vst [vmem:[%s6] sm:$0xff] %v1073
  %s1076 = scalar_lea.vmem [#allocation3], 128
  %v1077 = vld [vmem:[%s1076] sm:$0xff]
  %v1078 = vld [vmem:[%s1076 + $0x8] sm:$0xff]
  %v1079 = vld [vmem:[%s1076 + $0x10] sm:$0xff]
  %v1080 = vld [vmem:[%s1076 + $0x18] sm:$0xff]
  %v1081 = vld [vmem:[%s1076 + $0x20] sm:$0xff]
  %v1082 = vld [vmem:[%s1076 + $0x28] sm:$0xff]
  %v1083 = vld [vmem:[%s1076 + $0x30] sm:$0xff]
  %v1084 = vld [vmem:[%s1076 + $0x38] sm:$0xff]
  %v1085 = vld [vmem:[%s1076 + $0x40] sm:$0xff]
  %v1086 = vld [vmem:[%s1076 + $0x48] sm:$0xff]
  %v1087 = vld [vmem:[%s1076 + $0x50] sm:$0xff]
  %v1088 = vld [vmem:[%s1076 + $0x58] sm:$0xff]
  %v1089 = vld [vmem:[%s1076 + $0x60] sm:$0xff]
  %v1090 = vld [vmem:[%s1076 + $0x68] sm:$0xff]
  %v1091 = vld [vmem:[%s1076 + $0x70] sm:$0xff]
  %v1092 = vld [vmem:[%s1076 + $0x78] sm:$0xff]
  %v1093 = vmul.f32 %v806, %v1077
  %v1094 = vmul.f32 %v807, %v1078
  %v1095 = vmul.f32 %v806, %v1079
  %v1096 = vmul.f32 %v807, %v1080
  %v1097 = vmul.f32 %v806, %v1081
  %v1098 = vmul.f32 %v807, %v1082
  %v1099 = vmul.f32 %v806, %v1083
  %v1100 = vmul.f32 %v807, %v1084
  %v1101 = vmul.f32 %v806, %v1085
  %v1102 = vmul.f32 %v807, %v1086
  %v1103 = vmul.f32 %v806, %v1087
  %v1104 = vmul.f32 %v807, %v1088
  %v1105 = vmul.f32 %v806, %v1089
  %v1106 = vmul.f32 %v807, %v1090
  %v1107 = vmul.f32 %v806, %v1091
  %v1108 = vmul.f32 %v807, %v1092
  %s1109 = scalar_lea.vmem [#allocation3], 144
  %v1110 = vld [vmem:[%s1109] sm:$0xff]
  %v1111 = vld [vmem:[%s1109 + $0x8] sm:$0xff]
  %v1112 = vld [vmem:[%s1109 + $0x10] sm:$0xff]
  %v1113 = vld [vmem:[%s1109 + $0x18] sm:$0xff]
  %v1114 = vld [vmem:[%s1109 + $0x20] sm:$0xff]
  %v1115 = vld [vmem:[%s1109 + $0x28] sm:$0xff]
  %v1116 = vld [vmem:[%s1109 + $0x30] sm:$0xff]
  %v1117 = vld [vmem:[%s1109 + $0x38] sm:$0xff]
  %v1118 = vld [vmem:[%s1109 + $0x40] sm:$0xff]
  %v1119 = vld [vmem:[%s1109 + $0x48] sm:$0xff]
  %v1120 = vld [vmem:[%s1109 + $0x50] sm:$0xff]
  %v1121 = vld [vmem:[%s1109 + $0x58] sm:$0xff]
  %v1122 = vld [vmem:[%s1109 + $0x60] sm:$0xff]
  %v1123 = vld [vmem:[%s1109 + $0x68] sm:$0xff]
  %v1124 = vld [vmem:[%s1109 + $0x70] sm:$0xff]
  %v1125 = vld [vmem:[%s1109 + $0x78] sm:$0xff]
  %v1126 = vmul.f32 %v809, %v1110
  %v1127 = vmul.f32 %v810, %v1111
  %v1128 = vmul.f32 %v809, %v1112
  %v1129 = vmul.f32 %v810, %v1113
  %v1130 = vmul.f32 %v809, %v1114
  %v1131 = vmul.f32 %v810, %v1115
  %v1132 = vmul.f32 %v809, %v1116
  %v1133 = vmul.f32 %v810, %v1117
  %v1134 = vmul.f32 %v809, %v1118
  %v1135 = vmul.f32 %v810, %v1119
  %v1136 = vmul.f32 %v809, %v1120
  %v1137 = vmul.f32 %v810, %v1121
  %v1138 = vmul.f32 %v809, %v1122
  %v1139 = vmul.f32 %v810, %v1123
  %v1140 = vmul.f32 %v809, %v1124
  %v1141 = vmul.f32 %v810, %v1125
  %v1142 = vadd.f32 %v1093, %v1126
  %v1143 = vadd.f32 %v1094, %v1127
  %v1144 = vadd.f32 %v1095, %v1128
  %v1145 = vadd.f32 %v1096, %v1129
  %v1146 = vadd.f32 %v1097, %v1130
  %v1147 = vadd.f32 %v1098, %v1131
  %v1148 = vadd.f32 %v1099, %v1132
  %v1149 = vadd.f32 %v1100, %v1133
  %v1150 = vadd.f32 %v1101, %v1134
  %v1151 = vadd.f32 %v1102, %v1135
  %v1152 = vadd.f32 %v1103, %v1136
  %v1153 = vadd.f32 %v1104, %v1137
  %v1154 = vadd.f32 %v1105, %v1138
  %v1155 = vadd.f32 %v1106, %v1139
  %v1156 = vadd.f32 %v1107, %v1140
  %v1157 = vadd.f32 %v1108, %v1141
  %s1158 = scalar_lea.vmem [#allocation3], 160
  %v1159 = vld [vmem:[%s1158] sm:$0xff]
  %v1160 = vld [vmem:[%s1158 + $0x8] sm:$0xff]
  %v1161 = vld [vmem:[%s1158 + $0x10] sm:$0xff]
  %v1162 = vld [vmem:[%s1158 + $0x18] sm:$0xff]
  %v1163 = vld [vmem:[%s1158 + $0x20] sm:$0xff]
  %v1164 = vld [vmem:[%s1158 + $0x28] sm:$0xff]
  %v1165 = vld [vmem:[%s1158 + $0x30] sm:$0xff]
  %v1166 = vld [vmem:[%s1158 + $0x38] sm:$0xff]
  %v1167 = vld [vmem:[%s1158 + $0x40] sm:$0xff]
  %v1168 = vld [vmem:[%s1158 + $0x48] sm:$0xff]
  %v1169 = vld [vmem:[%s1158 + $0x50] sm:$0xff]
  %v1170 = vld [vmem:[%s1158 + $0x58] sm:$0xff]
  %v1171 = vld [vmem:[%s1158 + $0x60] sm:$0xff]
  %v1172 = vld [vmem:[%s1158 + $0x68] sm:$0xff]
  %v1173 = vld [vmem:[%s1158 + $0x70] sm:$0xff]
  %v1174 = vld [vmem:[%s1158 + $0x78] sm:$0xff]
  %v1175 = vmul.f32 %v812, %v1159
  %v1176 = vmul.f32 %v813, %v1160
  %v1177 = vmul.f32 %v812, %v1161
  %v1178 = vmul.f32 %v813, %v1162
  %v1179 = vmul.f32 %v812, %v1163
  %v1180 = vmul.f32 %v813, %v1164
  %v1181 = vmul.f32 %v812, %v1165
  %v1182 = vmul.f32 %v813, %v1166
  %v1183 = vmul.f32 %v812, %v1167
  %v1184 = vmul.f32 %v813, %v1168
  %v1185 = vmul.f32 %v812, %v1169
  %v1186 = vmul.f32 %v813, %v1170
  %v1187 = vmul.f32 %v812, %v1171
  %v1188 = vmul.f32 %v813, %v1172
  %v1189 = vmul.f32 %v812, %v1173
  %v1190 = vmul.f32 %v813, %v1174
  %v1191 = vadd.f32 %v1142, %v1175
  %v1192 = vadd.f32 %v1143, %v1176
  %v1193 = vadd.f32 %v1144, %v1177
  %v1194 = vadd.f32 %v1145, %v1178
  %v1195 = vadd.f32 %v1146, %v1179
  %v1196 = vadd.f32 %v1147, %v1180
  %v1197 = vadd.f32 %v1148, %v1181
  %v1198 = vadd.f32 %v1149, %v1182
  %v1199 = vadd.f32 %v1150, %v1183
  %v1200 = vadd.f32 %v1151, %v1184
  %v1201 = vadd.f32 %v1152, %v1185
  %v1202 = vadd.f32 %v1153, %v1186
  %v1203 = vadd.f32 %v1154, %v1187
  %v1204 = vadd.f32 %v1155, %v1188
  %v1205 = vadd.f32 %v1156, %v1189
  %v1206 = vadd.f32 %v1157, %v1190
  %s1207 = scalar_lea.vmem [#allocation3], 176
  %v1208 = vld [vmem:[%s1207] sm:$0xff]
  %v1209 = vld [vmem:[%s1207 + $0x8] sm:$0xff]
  %v1210 = vld [vmem:[%s1207 + $0x10] sm:$0xff]
  %v1211 = vld [vmem:[%s1207 + $0x18] sm:$0xff]
  %v1212 = vld [vmem:[%s1207 + $0x20] sm:$0xff]
  %v1213 = vld [vmem:[%s1207 + $0x28] sm:$0xff]
  %v1214 = vld [vmem:[%s1207 + $0x30] sm:$0xff]
  %v1215 = vld [vmem:[%s1207 + $0x38] sm:$0xff]
  %v1216 = vld [vmem:[%s1207 + $0x40] sm:$0xff]
  %v1217 = vld [vmem:[%s1207 + $0x48] sm:$0xff]
  %v1218 = vld [vmem:[%s1207 + $0x50] sm:$0xff]
  %v1219 = vld [vmem:[%s1207 + $0x58] sm:$0xff]
  %v1220 = vld [vmem:[%s1207 + $0x60] sm:$0xff]
  %v1221 = vld [vmem:[%s1207 + $0x68] sm:$0xff]
  %v1222 = vld [vmem:[%s1207 + $0x70] sm:$0xff]
  %v1223 = vld [vmem:[%s1207 + $0x78] sm:$0xff]
  %v1224 = vmul.f32 %v815, %v1208
  %v1225 = vmul.f32 %v816, %v1209
  %v1226 = vmul.f32 %v815, %v1210
  %v1227 = vmul.f32 %v816, %v1211
  %v1228 = vmul.f32 %v815, %v1212
  %v1229 = vmul.f32 %v816, %v1213
  %v1230 = vmul.f32 %v815, %v1214
  %v1231 = vmul.f32 %v816, %v1215
  %v1232 = vmul.f32 %v815, %v1216
  %v1233 = vmul.f32 %v816, %v1217
  %v1234 = vmul.f32 %v815, %v1218
  %v1235 = vmul.f32 %v816, %v1219
  %v1236 = vmul.f32 %v815, %v1220
  %v1237 = vmul.f32 %v816, %v1221
  %v1238 = vmul.f32 %v815, %v1222
  %v1239 = vmul.f32 %v816, %v1223
  %v1240 = vadd.f32 %v1191, %v1224
  %v1241 = vadd.f32 %v1192, %v1225
  %v1242 = vadd.f32 %v1193, %v1226
  %v1243 = vadd.f32 %v1194, %v1227
  %v1244 = vadd.f32 %v1195, %v1228
  %v1245 = vadd.f32 %v1196, %v1229
  %v1246 = vadd.f32 %v1197, %v1230
  %v1247 = vadd.f32 %v1198, %v1231
  %v1248 = vadd.f32 %v1199, %v1232
  %v1249 = vadd.f32 %v1200, %v1233
  %v1250 = vadd.f32 %v1201, %v1234
  %v1251 = vadd.f32 %v1202, %v1235
  %v1252 = vadd.f32 %v1203, %v1236
  %v1253 = vadd.f32 %v1204, %v1237
  %v1254 = vadd.f32 %v1205, %v1238
  %v1255 = vadd.f32 %v1206, %v1239
  %v1256 = vadd.f32 %v1240, %v1241
  %v1257 = vrot.slane %v1256, 4
  %v1258 = vadd.f32 %v1256, %v1257
  %v1259 = vrot.slane %v1258, 2
  %v1260 = vadd.f32 %v1258, %v1259
  %v1261 = vrot.slane %v1260, 1
  %v1262 = vadd.f32 %v1260, %v1261
  %v1263 = vadd.f32 %v1242, %v1243
  %v1264 = vrot.slane %v1263, 4
  %v1265 = vadd.f32 %v1263, %v1264
  %v1266 = vrot.slane %v1265, 2
  %v1267 = vadd.f32 %v1265, %v1266
  %v1268 = vrot.slane %v1267, 1
  %v1269 = vadd.f32 %v1267, %v1268
  %v1270 = vadd.f32 %v1244, %v1245
  %v1271 = vrot.slane %v1270, 4
  %v1272 = vadd.f32 %v1270, %v1271
  %v1273 = vrot.slane %v1272, 2
  %v1274 = vadd.f32 %v1272, %v1273
  %v1275 = vrot.slane %v1274, 1
  %v1276 = vadd.f32 %v1274, %v1275
  %v1277 = vadd.f32 %v1246, %v1247
  %v1278 = vrot.slane %v1277, 4
  %v1279 = vadd.f32 %v1277, %v1278
  %v1280 = vrot.slane %v1279, 2
  %v1281 = vadd.f32 %v1279, %v1280
  %v1282 = vrot.slane %v1281, 1
  %v1283 = vadd.f32 %v1281, %v1282
  %v1284 = vadd.f32 %v1248, %v1249
  %v1285 = vrot.slane %v1284, 4
  %v1286 = vadd.f32 %v1284, %v1285
  %v1287 = vrot.slane %v1286, 2
  %v1288 = vadd.f32 %v1286, %v1287
  %v1289 = vrot.slane %v1288, 1
  %v1290 = vadd.f32 %v1288, %v1289
  %v1291 = vadd.f32 %v1250, %v1251
  %v1292 = vrot.slane %v1291, 4
  %v1293 = vadd.f32 %v1291, %v1292
  %v1294 = vrot.slane %v1293, 2
  %v1295 = vadd.f32 %v1293, %v1294
  %v1296 = vrot.slane %v1295, 1
  %v1297 = vadd.f32 %v1295, %v1296
  %v1298 = vadd.f32 %v1252, %v1253
  %v1299 = vrot.slane %v1298, 4
  %v1300 = vadd.f32 %v1298, %v1299
  %v1301 = vrot.slane %v1300, 2
  %v1302 = vadd.f32 %v1300, %v1301
  %v1303 = vrot.slane %v1302, 1
  %v1304 = vadd.f32 %v1302, %v1303
  %v1305 = vadd.f32 %v1254, %v1255
  %v1306 = vrot.slane %v1305, 4
  %v1307 = vadd.f32 %v1305, %v1306
  %v1308 = vrot.slane %v1307, 2
  %v1309 = vadd.f32 %v1307, %v1308
  %v1310 = vrot.slane %v1309, 1
  %v1311 = vadd.f32 %v1309, %v1310
  %v1320 = vsel %vm1060, %v1269, %v1262
  %v1321 = vsel %vm1062, %v1276, %v1320
  %v1322 = vsel %vm1064, %v1283, %v1321
  %v1323 = vsel %vm1066, %v1290, %v1322
  %v1324 = vsel %vm1068, %v1297, %v1323
  %v1325 = vsel %vm1070, %v1304, %v1324
  %v1326 = vsel %vm1072, %v1311, %v1325
  %1328 = vst [vmem:[%s6 + $0x8] sm:$0xff] %v1326
  %s1329 = scalar_lea.vmem [#allocation3], 256
  %v1330 = vld [vmem:[%s1329] sm:$0xff]
  %v1331 = vld [vmem:[%s1329 + $0x8] sm:$0xff]
  %v1332 = vld [vmem:[%s1329 + $0x10] sm:$0xff]
  %v1333 = vld [vmem:[%s1329 + $0x18] sm:$0xff]
  %v1334 = vld [vmem:[%s1329 + $0x20] sm:$0xff]
  %v1335 = vld [vmem:[%s1329 + $0x28] sm:$0xff]
  %v1336 = vld [vmem:[%s1329 + $0x30] sm:$0xff]
  %v1337 = vld [vmem:[%s1329 + $0x38] sm:$0xff]
  %v1338 = vld [vmem:[%s1329 + $0x40] sm:$0xff]
  %v1339 = vld [vmem:[%s1329 + $0x48] sm:$0xff]
  %v1340 = vld [vmem:[%s1329 + $0x50] sm:$0xff]
  %v1341 = vld [vmem:[%s1329 + $0x58] sm:$0xff]
  %v1342 = vld [vmem:[%s1329 + $0x60] sm:$0xff]
  %v1343 = vld [vmem:[%s1329 + $0x68] sm:$0xff]
  %v1344 = vld [vmem:[%s1329 + $0x70] sm:$0xff]
  %v1345 = vld [vmem:[%s1329 + $0x78] sm:$0xff]
  %v1346 = vmul.f32 %v806, %v1330
  %v1347 = vmul.f32 %v807, %v1331
  %v1348 = vmul.f32 %v806, %v1332
  %v1349 = vmul.f32 %v807, %v1333
  %v1350 = vmul.f32 %v806, %v1334
  %v1351 = vmul.f32 %v807, %v1335
  %v1352 = vmul.f32 %v806, %v1336
  %v1353 = vmul.f32 %v807, %v1337
  %v1354 = vmul.f32 %v806, %v1338
  %v1355 = vmul.f32 %v807, %v1339
  %v1356 = vmul.f32 %v806, %v1340
  %v1357 = vmul.f32 %v807, %v1341
  %v1358 = vmul.f32 %v806, %v1342
  %v1359 = vmul.f32 %v807, %v1343
  %v1360 = vmul.f32 %v806, %v1344
  %v1361 = vmul.f32 %v807, %v1345
  %s1362 = scalar_lea.vmem [#allocation3], 272
  %v1363 = vld [vmem:[%s1362] sm:$0xff]
  %v1364 = vld [vmem:[%s1362 + $0x8] sm:$0xff]
  %v1365 = vld [vmem:[%s1362 + $0x10] sm:$0xff]
  %v1366 = vld [vmem:[%s1362 + $0x18] sm:$0xff]
  %v1367 = vld [vmem:[%s1362 + $0x20] sm:$0xff]
  %v1368 = vld [vmem:[%s1362 + $0x28] sm:$0xff]
  %v1369 = vld [vmem:[%s1362 + $0x30] sm:$0xff]
  %v1370 = vld [vmem:[%s1362 + $0x38] sm:$0xff]
  %v1371 = vld [vmem:[%s1362 + $0x40] sm:$0xff]
  %v1372 = vld [vmem:[%s1362 + $0x48] sm:$0xff]
  %v1373 = vld [vmem:[%s1362 + $0x50] sm:$0xff]
  %v1374 = vld [vmem:[%s1362 + $0x58] sm:$0xff]
  %v1375 = vld [vmem:[%s1362 + $0x60] sm:$0xff]
  %v1376 = vld [vmem:[%s1362 + $0x68] sm:$0xff]
  %v1377 = vld [vmem:[%s1362 + $0x70] sm:$0xff]
  %v1378 = vld [vmem:[%s1362 + $0x78] sm:$0xff]
  %v1379 = vmul.f32 %v809, %v1363
  %v1380 = vmul.f32 %v810, %v1364
  %v1381 = vmul.f32 %v809, %v1365
  %v1382 = vmul.f32 %v810, %v1366
  %v1383 = vmul.f32 %v809, %v1367
  %v1384 = vmul.f32 %v810, %v1368
  %v1385 = vmul.f32 %v809, %v1369
  %v1386 = vmul.f32 %v810, %v1370
  %v1387 = vmul.f32 %v809, %v1371
  %v1388 = vmul.f32 %v810, %v1372
  %v1389 = vmul.f32 %v809, %v1373
  %v1390 = vmul.f32 %v810, %v1374
  %v1391 = vmul.f32 %v809, %v1375
  %v1392 = vmul.f32 %v810, %v1376
  %v1393 = vmul.f32 %v809, %v1377
  %v1394 = vmul.f32 %v810, %v1378
  %v1395 = vadd.f32 %v1346, %v1379
  %v1396 = vadd.f32 %v1347, %v1380
  %v1397 = vadd.f32 %v1348, %v1381
  %v1398 = vadd.f32 %v1349, %v1382
  %v1399 = vadd.f32 %v1350, %v1383
  %v1400 = vadd.f32 %v1351, %v1384
  %v1401 = vadd.f32 %v1352, %v1385
  %v1402 = vadd.f32 %v1353, %v1386
  %v1403 = vadd.f32 %v1354, %v1387
  %v1404 = vadd.f32 %v1355, %v1388
  %v1405 = vadd.f32 %v1356, %v1389
  %v1406 = vadd.f32 %v1357, %v1390
  %v1407 = vadd.f32 %v1358, %v1391
  %v1408 = vadd.f32 %v1359, %v1392
  %v1409 = vadd.f32 %v1360, %v1393
  %v1410 = vadd.f32 %v1361, %v1394
  %s1411 = scalar_lea.vmem [#allocation3], 288
  %v1412 = vld [vmem:[%s1411] sm:$0xff]
  %v1413 = vld [vmem:[%s1411 + $0x8] sm:$0xff]
  %v1414 = vld [vmem:[%s1411 + $0x10] sm:$0xff]
  %v1415 = vld [vmem:[%s1411 + $0x18] sm:$0xff]
  %v1416 = vld [vmem:[%s1411 + $0x20] sm:$0xff]
  %v1417 = vld [vmem:[%s1411 + $0x28] sm:$0xff]
  %v1418 = vld [vmem:[%s1411 + $0x30] sm:$0xff]
  %v1419 = vld [vmem:[%s1411 + $0x38] sm:$0xff]
  %v1420 = vld [vmem:[%s1411 + $0x40] sm:$0xff]
  %v1421 = vld [vmem:[%s1411 + $0x48] sm:$0xff]
  %v1422 = vld [vmem:[%s1411 + $0x50] sm:$0xff]
  %v1423 = vld [vmem:[%s1411 + $0x58] sm:$0xff]
  %v1424 = vld [vmem:[%s1411 + $0x60] sm:$0xff]
  %v1425 = vld [vmem:[%s1411 + $0x68] sm:$0xff]
  %v1426 = vld [vmem:[%s1411 + $0x70] sm:$0xff]
  %v1427 = vld [vmem:[%s1411 + $0x78] sm:$0xff]
  %v1428 = vmul.f32 %v812, %v1412
  %v1429 = vmul.f32 %v813, %v1413
  %v1430 = vmul.f32 %v812, %v1414
  %v1431 = vmul.f32 %v813, %v1415
  %v1432 = vmul.f32 %v812, %v1416
  %v1433 = vmul.f32 %v813, %v1417
  %v1434 = vmul.f32 %v812, %v1418
  %v1435 = vmul.f32 %v813, %v1419
  %v1436 = vmul.f32 %v812, %v1420
  %v1437 = vmul.f32 %v813, %v1421
  %v1438 = vmul.f32 %v812, %v1422
  %v1439 = vmul.f32 %v813, %v1423
  %v1440 = vmul.f32 %v812, %v1424
  %v1441 = vmul.f32 %v813, %v1425
  %v1442 = vmul.f32 %v812, %v1426
  %v1443 = vmul.f32 %v813, %v1427
  %v1444 = vadd.f32 %v1395, %v1428
  %v1445 = vadd.f32 %v1396, %v1429
  %v1446 = vadd.f32 %v1397, %v1430
  %v1447 = vadd.f32 %v1398, %v1431
  %v1448 = vadd.f32 %v1399, %v1432
  %v1449 = vadd.f32 %v1400, %v1433
  %v1450 = vadd.f32 %v1401, %v1434
  %v1451 = vadd.f32 %v1402, %v1435
  %v1452 = vadd.f32 %v1403, %v1436
  %v1453 = vadd.f32 %v1404, %v1437
  %v1454 = vadd.f32 %v1405, %v1438
  %v1455 = vadd.f32 %v1406, %v1439
  %v1456 = vadd.f32 %v1407, %v1440
  %v1457 = vadd.f32 %v1408, %v1441
  %v1458 = vadd.f32 %v1409, %v1442
  %v1459 = vadd.f32 %v1410, %v1443
  %s1460 = scalar_lea.vmem [#allocation3], 304
  %v1461 = vld [vmem:[%s1460] sm:$0xff]
  %v1462 = vld [vmem:[%s1460 + $0x8] sm:$0xff]
  %v1463 = vld [vmem:[%s1460 + $0x10] sm:$0xff]
  %v1464 = vld [vmem:[%s1460 + $0x18] sm:$0xff]
  %v1465 = vld [vmem:[%s1460 + $0x20] sm:$0xff]
  %v1466 = vld [vmem:[%s1460 + $0x28] sm:$0xff]
  %v1467 = vld [vmem:[%s1460 + $0x30] sm:$0xff]
  %v1468 = vld [vmem:[%s1460 + $0x38] sm:$0xff]
  %v1469 = vld [vmem:[%s1460 + $0x40] sm:$0xff]
  %v1470 = vld [vmem:[%s1460 + $0x48] sm:$0xff]
  %v1471 = vld [vmem:[%s1460 + $0x50] sm:$0xff]
  %v1472 = vld [vmem:[%s1460 + $0x58] sm:$0xff]
  %v1473 = vld [vmem:[%s1460 + $0x60] sm:$0xff]
  %v1474 = vld [vmem:[%s1460 + $0x68] sm:$0xff]
  %v1475 = vld [vmem:[%s1460 + $0x70] sm:$0xff]
  %v1476 = vld [vmem:[%s1460 + $0x78] sm:$0xff]
  %v1477 = vmul.f32 %v815, %v1461
  %v1478 = vmul.f32 %v816, %v1462
  %v1479 = vmul.f32 %v815, %v1463
  %v1480 = vmul.f32 %v816, %v1464
  %v1481 = vmul.f32 %v815, %v1465
  %v1482 = vmul.f32 %v816, %v1466
  %v1483 = vmul.f32 %v815, %v1467
  %v1484 = vmul.f32 %v816, %v1468
  %v1485 = vmul.f32 %v815, %v1469
  %v1486 = vmul.f32 %v816, %v1470
  %v1487 = vmul.f32 %v815, %v1471
  %v1488 = vmul.f32 %v816, %v1472
  %v1489 = vmul.f32 %v815, %v1473
  %v1490 = vmul.f32 %v816, %v1474
  %v1491 = vmul.f32 %v815, %v1475
  %v1492 = vmul.f32 %v816, %v1476
  %v1493 = vadd.f32 %v1444, %v1477
  %v1494 = vadd.f32 %v1445, %v1478
  %v1495 = vadd.f32 %v1446, %v1479
  %v1496 = vadd.f32 %v1447, %v1480
  %v1497 = vadd.f32 %v1448, %v1481
  %v1498 = vadd.f32 %v1449, %v1482
  %v1499 = vadd.f32 %v1450, %v1483
  %v1500 = vadd.f32 %v1451, %v1484
  %v1501 = vadd.f32 %v1452, %v1485
  %v1502 = vadd.f32 %v1453, %v1486
  %v1503 = vadd.f32 %v1454, %v1487
  %v1504 = vadd.f32 %v1455, %v1488
  %v1505 = vadd.f32 %v1456, %v1489
  %v1506 = vadd.f32 %v1457, %v1490
  %v1507 = vadd.f32 %v1458, %v1491
  %v1508 = vadd.f32 %v1459, %v1492
  %v1509 = vadd.f32 %v1493, %v1494
  %v1510 = vrot.slane %v1509, 4
  %v1511 = vadd.f32 %v1509, %v1510
  %v1512 = vrot.slane %v1511, 2
  %v1513 = vadd.f32 %v1511, %v1512
  %v1514 = vrot.slane %v1513, 1
  %v1515 = vadd.f32 %v1513, %v1514
  %v1516 = vadd.f32 %v1495, %v1496
  %v1517 = vrot.slane %v1516, 4
  %v1518 = vadd.f32 %v1516, %v1517
  %v1519 = vrot.slane %v1518, 2
  %v1520 = vadd.f32 %v1518, %v1519
  %v1521 = vrot.slane %v1520, 1
  %v1522 = vadd.f32 %v1520, %v1521
  %v1523 = vadd.f32 %v1497, %v1498
  %v1524 = vrot.slane %v1523, 4
  %v1525 = vadd.f32 %v1523, %v1524
  %v1526 = vrot.slane %v1525, 2
  %v1527 = vadd.f32 %v1525, %v1526
  %v1528 = vrot.slane %v1527, 1
  %v1529 = vadd.f32 %v1527, %v1528
  %v1530 = vadd.f32 %v1499, %v1500
  %v1531 = vrot.slane %v1530, 4
  %v1532 = vadd.f32 %v1530, %v1531
  %v1533 = vrot.slane %v1532, 2
  %v1534 = vadd.f32 %v1532, %v1533
  %v1535 = vrot.slane %v1534, 1
  %v1536 = vadd.f32 %v1534, %v1535
  %v1537 = vadd.f32 %v1501, %v1502
  %v1538 = vrot.slane %v1537, 4
  %v1539 = vadd.f32 %v1537, %v1538
  %v1540 = vrot.slane %v1539, 2
  %v1541 = vadd.f32 %v1539, %v1540
  %v1542 = vrot.slane %v1541, 1
  %v1543 = vadd.f32 %v1541, %v1542
  %v1544 = vadd.f32 %v1503, %v1504
  %v1545 = vrot.slane %v1544, 4
  %v1546 = vadd.f32 %v1544, %v1545
  %v1547 = vrot.slane %v1546, 2
  %v1548 = vadd.f32 %v1546, %v1547
  %v1549 = vrot.slane %v1548, 1
  %v1550 = vadd.f32 %v1548, %v1549
  %v1551 = vadd.f32 %v1505, %v1506
  %v1552 = vrot.slane %v1551, 4
  %v1553 = vadd.f32 %v1551, %v1552
  %v1554 = vrot.slane %v1553, 2
  %v1555 = vadd.f32 %v1553, %v1554
  %v1556 = vrot.slane %v1555, 1
  %v1557 = vadd.f32 %v1555, %v1556
  %v1558 = vadd.f32 %v1507, %v1508
  %v1559 = vrot.slane %v1558, 4
  %v1560 = vadd.f32 %v1558, %v1559
  %v1561 = vrot.slane %v1560, 2
  %v1562 = vadd.f32 %v1560, %v1561
  %v1563 = vrot.slane %v1562, 1
  %v1564 = vadd.f32 %v1562, %v1563
  %v1573 = vsel %vm1060, %v1522, %v1515
  %v1574 = vsel %vm1062, %v1529, %v1573
  %v1575 = vsel %vm1064, %v1536, %v1574
  %v1576 = vsel %vm1066, %v1543, %v1575
  %v1577 = vsel %vm1068, %v1550, %v1576
  %v1578 = vsel %vm1070, %v1557, %v1577
  %v1579 = vsel %vm1072, %v1564, %v1578
  %1581 = vst [vmem:[%s6 + $0x10] sm:$0xff] %v1579
  %s1582 = scalar_lea.vmem [#allocation3], 384
  %v1583 = vld [vmem:[%s1582] sm:$0xff]
  %v1584 = vld [vmem:[%s1582 + $0x8] sm:$0xff]
  %v1585 = vld [vmem:[%s1582 + $0x10] sm:$0xff]
  %v1586 = vld [vmem:[%s1582 + $0x18] sm:$0xff]
  %v1587 = vld [vmem:[%s1582 + $0x20] sm:$0xff]
  %v1588 = vld [vmem:[%s1582 + $0x28] sm:$0xff]
  %v1589 = vld [vmem:[%s1582 + $0x30] sm:$0xff]
  %v1590 = vld [vmem:[%s1582 + $0x38] sm:$0xff]
  %v1591 = vld [vmem:[%s1582 + $0x40] sm:$0xff]
  %v1592 = vld [vmem:[%s1582 + $0x48] sm:$0xff]
  %v1593 = vld [vmem:[%s1582 + $0x50] sm:$0xff]
  %v1594 = vld [vmem:[%s1582 + $0x58] sm:$0xff]
  %v1595 = vld [vmem:[%s1582 + $0x60] sm:$0xff]
  %v1596 = vld [vmem:[%s1582 + $0x68] sm:$0xff]
  %v1597 = vld [vmem:[%s1582 + $0x70] sm:$0xff]
  %v1598 = vld [vmem:[%s1582 + $0x78] sm:$0xff]
  %v1599 = vmul.f32 %v806, %v1583
  %v1600 = vmul.f32 %v807, %v1584
  %v1601 = vmul.f32 %v806, %v1585
  %v1602 = vmul.f32 %v807, %v1586
  %v1603 = vmul.f32 %v806, %v1587
  %v1604 = vmul.f32 %v807, %v1588
  %v1605 = vmul.f32 %v806, %v1589
  %v1606 = vmul.f32 %v807, %v1590
  %v1607 = vmul.f32 %v806, %v1591
  %v1608 = vmul.f32 %v807, %v1592
  %v1609 = vmul.f32 %v806, %v1593
  %v1610 = vmul.f32 %v807, %v1594
  %v1611 = vmul.f32 %v806, %v1595
  %v1612 = vmul.f32 %v807, %v1596
  %v1613 = vmul.f32 %v806, %v1597
  %v1614 = vmul.f32 %v807, %v1598
  %s1615 = scalar_lea.vmem [#allocation3], 400
  %v1616 = vld [vmem:[%s1615] sm:$0xff]
  %v1617 = vld [vmem:[%s1615 + $0x8] sm:$0xff]
  %v1618 = vld [vmem:[%s1615 + $0x10] sm:$0xff]
  %v1619 = vld [vmem:[%s1615 + $0x18] sm:$0xff]
  %v1620 = vld [vmem:[%s1615 + $0x20] sm:$0xff]
  %v1621 = vld [vmem:[%s1615 + $0x28] sm:$0xff]
  %v1622 = vld [vmem:[%s1615 + $0x30] sm:$0xff]
  %v1623 = vld [vmem:[%s1615 + $0x38] sm:$0xff]
  %v1624 = vld [vmem:[%s1615 + $0x40] sm:$0xff]
  %v1625 = vld [vmem:[%s1615 + $0x48] sm:$0xff]
  %v1626 = vld [vmem:[%s1615 + $0x50] sm:$0xff]
  %v1627 = vld [vmem:[%s1615 + $0x58] sm:$0xff]
  %v1628 = vld [vmem:[%s1615 + $0x60] sm:$0xff]
  %v1629 = vld [vmem:[%s1615 + $0x68] sm:$0xff]
  %v1630 = vld [vmem:[%s1615 + $0x70] sm:$0xff]
  %v1631 = vld [vmem:[%s1615 + $0x78] sm:$0xff]
  %v1632 = vmul.f32 %v809, %v1616
  %v1633 = vmul.f32 %v810, %v1617
  %v1634 = vmul.f32 %v809, %v1618
  %v1635 = vmul.f32 %v810, %v1619
  %v1636 = vmul.f32 %v809, %v1620
  %v1637 = vmul.f32 %v810, %v1621
  %v1638 = vmul.f32 %v809, %v1622
  %v1639 = vmul.f32 %v810, %v1623
  %v1640 = vmul.f32 %v809, %v1624
  %v1641 = vmul.f32 %v810, %v1625
  %v1642 = vmul.f32 %v809, %v1626
  %v1643 = vmul.f32 %v810, %v1627
  %v1644 = vmul.f32 %v809, %v1628
  %v1645 = vmul.f32 %v810, %v1629
  %v1646 = vmul.f32 %v809, %v1630
  %v1647 = vmul.f32 %v810, %v1631
  %v1648 = vadd.f32 %v1599, %v1632
  %v1649 = vadd.f32 %v1600, %v1633
  %v1650 = vadd.f32 %v1601, %v1634
  %v1651 = vadd.f32 %v1602, %v1635
  %v1652 = vadd.f32 %v1603, %v1636
  %v1653 = vadd.f32 %v1604, %v1637
  %v1654 = vadd.f32 %v1605, %v1638
  %v1655 = vadd.f32 %v1606, %v1639
  %v1656 = vadd.f32 %v1607, %v1640
  %v1657 = vadd.f32 %v1608, %v1641
  %v1658 = vadd.f32 %v1609, %v1642
  %v1659 = vadd.f32 %v1610, %v1643
  %v1660 = vadd.f32 %v1611, %v1644
  %v1661 = vadd.f32 %v1612, %v1645
  %v1662 = vadd.f32 %v1613, %v1646
  %v1663 = vadd.f32 %v1614, %v1647
  %s1664 = scalar_lea.vmem [#allocation3], 416
  %v1665 = vld [vmem:[%s1664] sm:$0xff]
  %v1666 = vld [vmem:[%s1664 + $0x8] sm:$0xff]
  %v1667 = vld [vmem:[%s1664 + $0x10] sm:$0xff]
  %v1668 = vld [vmem:[%s1664 + $0x18] sm:$0xff]
  %v1669 = vld [vmem:[%s1664 + $0x20] sm:$0xff]
  %v1670 = vld [vmem:[%s1664 + $0x28] sm:$0xff]
  %v1671 = vld [vmem:[%s1664 + $0x30] sm:$0xff]
  %v1672 = vld [vmem:[%s1664 + $0x38] sm:$0xff]
  %v1673 = vld [vmem:[%s1664 + $0x40] sm:$0xff]
  %v1674 = vld [vmem:[%s1664 + $0x48] sm:$0xff]
  %v1675 = vld [vmem:[%s1664 + $0x50] sm:$0xff]
  %v1676 = vld [vmem:[%s1664 + $0x58] sm:$0xff]
  %v1677 = vld [vmem:[%s1664 + $0x60] sm:$0xff]
  %v1678 = vld [vmem:[%s1664 + $0x68] sm:$0xff]
  %v1679 = vld [vmem:[%s1664 + $0x70] sm:$0xff]
  %v1680 = vld [vmem:[%s1664 + $0x78] sm:$0xff]
  %v1681 = vmul.f32 %v812, %v1665
  %v1682 = vmul.f32 %v813, %v1666
  %v1683 = vmul.f32 %v812, %v1667
  %v1684 = vmul.f32 %v813, %v1668
  %v1685 = vmul.f32 %v812, %v1669
  %v1686 = vmul.f32 %v813, %v1670
  %v1687 = vmul.f32 %v812, %v1671
  %v1688 = vmul.f32 %v813, %v1672
  %v1689 = vmul.f32 %v812, %v1673
  %v1690 = vmul.f32 %v813, %v1674
  %v1691 = vmul.f32 %v812, %v1675
  %v1692 = vmul.f32 %v813, %v1676
  %v1693 = vmul.f32 %v812, %v1677
  %v1694 = vmul.f32 %v813, %v1678
  %v1695 = vmul.f32 %v812, %v1679
  %v1696 = vmul.f32 %v813, %v1680
  %v1697 = vadd.f32 %v1648, %v1681
  %v1698 = vadd.f32 %v1649, %v1682
  %v1699 = vadd.f32 %v1650, %v1683
  %v1700 = vadd.f32 %v1651, %v1684
  %v1701 = vadd.f32 %v1652, %v1685
  %v1702 = vadd.f32 %v1653, %v1686
  %v1703 = vadd.f32 %v1654, %v1687
  %v1704 = vadd.f32 %v1655, %v1688
  %v1705 = vadd.f32 %v1656, %v1689
  %v1706 = vadd.f32 %v1657, %v1690
  %v1707 = vadd.f32 %v1658, %v1691
  %v1708 = vadd.f32 %v1659, %v1692
  %v1709 = vadd.f32 %v1660, %v1693
  %v1710 = vadd.f32 %v1661, %v1694
  %v1711 = vadd.f32 %v1662, %v1695
  %v1712 = vadd.f32 %v1663, %v1696
  %s1713 = scalar_lea.vmem [#allocation3], 432
  %v1714 = vld [vmem:[%s1713] sm:$0xff]
  %v1715 = vld [vmem:[%s1713 + $0x8] sm:$0xff]
  %v1716 = vld [vmem:[%s1713 + $0x10] sm:$0xff]
  %v1717 = vld [vmem:[%s1713 + $0x18] sm:$0xff]
  %v1718 = vld [vmem:[%s1713 + $0x20] sm:$0xff]
  %v1719 = vld [vmem:[%s1713 + $0x28] sm:$0xff]
  %v1720 = vld [vmem:[%s1713 + $0x30] sm:$0xff]
  %v1721 = vld [vmem:[%s1713 + $0x38] sm:$0xff]
  %v1722 = vld [vmem:[%s1713 + $0x40] sm:$0xff]
  %v1723 = vld [vmem:[%s1713 + $0x48] sm:$0xff]
  %v1724 = vld [vmem:[%s1713 + $0x50] sm:$0xff]
  %v1725 = vld [vmem:[%s1713 + $0x58] sm:$0xff]
  %v1726 = vld [vmem:[%s1713 + $0x60] sm:$0xff]
  %v1727 = vld [vmem:[%s1713 + $0x68] sm:$0xff]
  %v1728 = vld [vmem:[%s1713 + $0x70] sm:$0xff]
  %v1729 = vld [vmem:[%s1713 + $0x78] sm:$0xff]
  %v1730 = vmul.f32 %v815, %v1714
  %v1731 = vmul.f32 %v816, %v1715
  %v1732 = vmul.f32 %v815, %v1716
  %v1733 = vmul.f32 %v816, %v1717
  %v1734 = vmul.f32 %v815, %v1718
  %v1735 = vmul.f32 %v816, %v1719
  %v1736 = vmul.f32 %v815, %v1720
  %v1737 = vmul.f32 %v816, %v1721
  %v1738 = vmul.f32 %v815, %v1722
  %v1739 = vmul.f32 %v816, %v1723
  %v1740 = vmul.f32 %v815, %v1724
  %v1741 = vmul.f32 %v816, %v1725
  %v1742 = vmul.f32 %v815, %v1726
  %v1743 = vmul.f32 %v816, %v1727
  %v1744 = vmul.f32 %v815, %v1728
  %v1745 = vmul.f32 %v816, %v1729
  %v1746 = vadd.f32 %v1697, %v1730
  %v1747 = vadd.f32 %v1698, %v1731
  %v1748 = vadd.f32 %v1699, %v1732
  %v1749 = vadd.f32 %v1700, %v1733
  %v1750 = vadd.f32 %v1701, %v1734
  %v1751 = vadd.f32 %v1702, %v1735
  %v1752 = vadd.f32 %v1703, %v1736
  %v1753 = vadd.f32 %v1704, %v1737
  %v1754 = vadd.f32 %v1705, %v1738
  %v1755 = vadd.f32 %v1706, %v1739
  %v1756 = vadd.f32 %v1707, %v1740
  %v1757 = vadd.f32 %v1708, %v1741
  %v1758 = vadd.f32 %v1709, %v1742
  %v1759 = vadd.f32 %v1710, %v1743
  %v1760 = vadd.f32 %v1711, %v1744
  %v1761 = vadd.f32 %v1712, %v1745
  %v1762 = vadd.f32 %v1746, %v1747
  %v1763 = vrot.slane %v1762, 4
  %v1764 = vadd.f32 %v1762, %v1763
  %v1765 = vrot.slane %v1764, 2
  %v1766 = vadd.f32 %v1764, %v1765
  %v1767 = vrot.slane %v1766, 1
  %v1768 = vadd.f32 %v1766, %v1767
  %v1769 = vadd.f32 %v1748, %v1749
  %v1770 = vrot.slane %v1769, 4
  %v1771 = vadd.f32 %v1769, %v1770
  %v1772 = vrot.slane %v1771, 2
  %v1773 = vadd.f32 %v1771, %v1772
  %v1774 = vrot.slane %v1773, 1
  %v1775 = vadd.f32 %v1773, %v1774
  %v1776 = vadd.f32 %v1750, %v1751
  %v1777 = vrot.slane %v1776, 4
  %v1778 = vadd.f32 %v1776, %v1777
  %v1779 = vrot.slane %v1778, 2
  %v1780 = vadd.f32 %v1778, %v1779
  %v1781 = vrot.slane %v1780, 1
  %v1782 = vadd.f32 %v1780, %v1781
  %v1783 = vadd.f32 %v1752, %v1753
  %v1784 = vrot.slane %v1783, 4
  %v1785 = vadd.f32 %v1783, %v1784
  %v1786 = vrot.slane %v1785, 2
  %v1787 = vadd.f32 %v1785, %v1786
  %v1788 = vrot.slane %v1787, 1
  %v1789 = vadd.f32 %v1787, %v1788
  %v1790 = vadd.f32 %v1754, %v1755
  %v1791 = vrot.slane %v1790, 4
  %v1792 = vadd.f32 %v1790, %v1791
  %v1793 = vrot.slane %v1792, 2
  %v1794 = vadd.f32 %v1792, %v1793
  %v1795 = vrot.slane %v1794, 1
  %v1796 = vadd.f32 %v1794, %v1795
  %v1797 = vadd.f32 %v1756, %v1757
  %v1798 = vrot.slane %v1797, 4
  %v1799 = vadd.f32 %v1797, %v1798
  %v1800 = vrot.slane %v1799, 2
  %v1801 = vadd.f32 %v1799, %v1800
  %v1802 = vrot.slane %v1801, 1
  %v1803 = vadd.f32 %v1801, %v1802
  %v1804 = vadd.f32 %v1758, %v1759
  %v1805 = vrot.slane %v1804, 4
  %v1806 = vadd.f32 %v1804, %v1805
  %v1807 = vrot.slane %v1806, 2
  %v1808 = vadd.f32 %v1806, %v1807
  %v1809 = vrot.slane %v1808, 1
  %v1810 = vadd.f32 %v1808, %v1809
  %v1811 = vadd.f32 %v1760, %v1761
  %v1812 = vrot.slane %v1811, 4
  %v1813 = vadd.f32 %v1811, %v1812
  %v1814 = vrot.slane %v1813, 2
  %v1815 = vadd.f32 %v1813, %v1814
  %v1816 = vrot.slane %v1815, 1
  %v1817 = vadd.f32 %v1815, %v1816
  %v1826 = vsel %vm1060, %v1775, %v1768
  %v1827 = vsel %vm1062, %v1782, %v1826
  %v1828 = vsel %vm1064, %v1789, %v1827
  %v1829 = vsel %vm1066, %v1796, %v1828
  %v1830 = vsel %vm1068, %v1803, %v1829
  %v1831 = vsel %vm1070, %v1810, %v1830
  %v1832 = vsel %vm1072, %v1817, %v1831
  %1834 = vst [vmem:[%s6 + $0x18] sm:$0xff] %v1832
  // Predicated region
  $region41: #{waternet0313_forward.1} parent=0 // pred_check
    _
  $region42: #{waternet0313_forward.1} parent=0 // pred_check_branch
    %1836 = sbr.rel (0) target = $region44
  $region43: #{waternet0313_forward.1} parent=0 // pred_region
    _
  $region44: #{waternet0313_forward.1} parent=0 // pred_fallthru
    _
  // Predicated region
  $region45: #{waternet0313_forward.1} parent=0 // pred_check
    _
  $region46: #{waternet0313_forward.1} parent=0 // pred_check_branch
    %1838 = sbr.rel (0) target = $region48
  $region47: #{waternet0313_forward.1} parent=0 // pred_region
    _
  $region48: #{waternet0313_forward.1} parent=0 // pred_fallthru
    _

</llo_original>
